<compile_context>
chip_gen: v7x
topology: tpu7x:2x2x1
jax: 0.10.0
libtpu: 0.0.40
codegen_flags: <defaults>
</compile_context>

<pallas_src>
import jax
import jax.numpy as jnp
from jax.experimental import pallas as pl
from jax.experimental.pallas import tpu as pltpu

# ---------------- model dims (small, synthetic) ----------------
B = 2        # batch
S = 8        # sequence length
H = 64       # hidden size
NH = 4       # attention heads
DH = H // NH # head dim
F = 128      # FFN intermediate size
V = 50       # vocab size
L = 2        # encoder layers
NUM_CLASSES = 2
BS = B * S
PAD_OUT = 128   # lane-dense classifier output width (sliced to NUM_CLASSES outside)
OUT_ROWS = 8    # sublane-padded output rows (sliced to B outside)


def _layer_norm(y, g, b, eps=1e-5):
    mu = jnp.mean(y, axis=-1, keepdims=True)
    var = jnp.mean((y - mu) ** 2, axis=-1, keepdims=True)
    return (y - mu) * jax.lax.rsqrt(var + eps) * g + b


# ---------------- Pallas kernel: fused full forward ----------------
def fused_forward_kernel(
        x_ref, bias_ref, misc_ref,
        wqkv_ref, bqkv_ref, wo_ref, w1_ref, b1_ref, w2_ref, vecs_ref,
        wp_ref, wfc_ref, bfc_ref,
        o_ref):
    # Raw (word + pos + type) embeddings, LayerNorm'd here (f32).
    x = _layer_norm(x_ref[...], misc_ref[0:1, :], misc_ref[1:2, :])   # (BS, H)

    # Precomputed additive attention bias, already tiled over heads along the
    # sublane axis: (NH*BS, BS). Combines the block-diagonal segment mask
    # (no cross-sequence attention) with the key-padding -1e9 bias.
    bias_tiled = bias_ref[...]
    scale = 1.0 / (DH ** 0.5)

    # TODO(synk): for real RoBERTa-base sizes, stream per-layer weight slabs
    # (pltpu.emit_pipeline / manual double buffer) and set vmem_limit_bytes —
    # especially on v7x's 64 MiB VMEM — instead of keeping all layers resident.
    # TODO(synk): for larger batches on v7x (2 TCs), add a "parallel" batch
    # grid axis instead of this single grid-free invocation.
    for li in range(L):                 # static layer loop, weights VMEM-resident
        wqkv, bqkv = wqkv_ref[li], bqkv_ref[li]          # (H, 3H) bf16, (1, 3H)
        wo, w1, b1, w2 = wo_ref[li], w1_ref[li], b1_ref[li], w2_ref[li]
        vecs = vecs_ref[li]                              # (6, H) f32
        bo, ln1g, ln1b = vecs[0:1], vecs[1:2], vecs[2:3]
        b2, ln2g, ln2b = vecs[3:4], vecs[4:5], vecs[5:6]

        # Fused QKV projection over the whole flattened batch: one (BS,3H) matmul.
        xb = x.astype(jnp.bfloat16)                       # hoisted cast
        qkv = jnp.dot(xb, wqkv, preferred_element_type=jnp.float32) + bqkv
        qb = (qkv[:, :H] * scale).astype(jnp.bfloat16)    # scale folded into q
        kb = qkv[:, H:2 * H].astype(jnp.bfloat16)
        vb = qkv[:, 2 * H:].astype(jnp.bfloat16)

        # Block-diagonal attention: per-head (BS, BS) score tiles, stacked along
        # sublanes so the softmax chain runs once per layer.
        scores = jnp.concatenate(
            [jax.lax.dot_general(qb[:, h * DH:(h + 1) * DH],
                                 kb[:, h * DH:(h + 1) * DH],
                                 (((1,), (1,)), ((), ())),
                                 preferred_element_type=jnp.float32)
             for h in range(NH)], axis=0)                 # (NH*BS, BS)
        scores = scores + bias_tiled
        smax = jnp.max(scores, axis=-1, keepdims=True)
        e = jnp.exp(scores - smax)
        denom = jnp.sum(e, axis=-1, keepdims=True)
        probs = (e * pl.reciprocal(denom, approx=True)).astype(jnp.bfloat16)

        # Per-head context, lane-concat into one (BS, H) tile, ONE output proj.
        ctx = jnp.concatenate(
            [jnp.dot(probs[h * BS:(h + 1) * BS, :], vb[:, h * DH:(h + 1) * DH],
                     preferred_element_type=jnp.float32)
             for h in range(NH)], axis=1)                 # (BS, H)
        attn_out = jnp.dot(ctx.astype(jnp.bfloat16), wo,
                           preferred_element_type=jnp.float32) + bo

        h1 = _layer_norm(x + attn_out, ln1g, ln1b)

        ff = jnp.dot(h1.astype(jnp.bfloat16), w1,
                     preferred_element_type=jnp.float32) + b1
        # TODO(synk): RoBERTa default GELU is the exact erf form; tanh approx used.
        ff = jax.nn.gelu(ff, approximate=True)
        ff = jnp.dot(ff.astype(jnp.bfloat16), w2,
                     preferred_element_type=jnp.float32) + b2
        x = _layer_norm(h1 + ff, ln2g, ln2b)

    # Pooler: tanh on the <s>/CLS token of each sequence (strided CLS gather).
    cls = x.reshape(B, S, H)[:, 0:1, :].reshape(B, H)     # (B, H)
    pooled = jnp.tanh(jnp.dot(cls.astype(jnp.bfloat16), wp_ref[...],
                              preferred_element_type=jnp.float32)
                      + misc_ref[2:3, :])
    # nn.Dropout(0.1) is the identity in eval mode.
    # TODO(synk): training-mode stochastic dropout (pltpu.prng_*) not applied.
    logits = jnp.dot(pooled.astype(jnp.bfloat16), wfc_ref[...],
                     preferred_element_type=jnp.float32) + bfc_ref[...]  # (B, 128)
    # Pad to a full (8, 128) tile so the final store is an unmasked vst.
    o_ref[...] = jnp.concatenate(
        [logits, jnp.zeros((OUT_ROWS - B, PAD_OUT), jnp.float32)], axis=0)


# ---------------- plain-JAX glue: params + embeddings + wrapper ----------------
def init_params(key):
    scale = 0.02
    keys = iter(jax.random.split(key, 8 + 16 * L))

    def nrm(shape):
        return scale * jax.random.normal(next(keys), shape, jnp.float32)

    params = {
        "word_emb": nrm((V, H)),
        "pos_emb": nrm((S, H)),
        "type_emb": nrm((1, H)),
        "emb_ln_g": jnp.ones((1, H), jnp.float32),
        "emb_ln_b": jnp.zeros((1, H), jnp.float32),
        "pooler_w": nrm((H, H)),
        "pooler_b": jnp.zeros((1, H), jnp.float32),
        "fc_w": nrm((H, NUM_CLASSES)),
        "fc_b": jnp.zeros((1, NUM_CLASSES), jnp.float32),
        "layers": [],
    }
    for _ in range(L):
        params["layers"].append({
            "wq": nrm((H, H)), "bq": jnp.zeros((1, H), jnp.float32),
            "wk": nrm((H, H)), "bk": jnp.zeros((1, H), jnp.float32),
            "wv": nrm((H, H)), "bv": jnp.zeros((1, H), jnp.float32),
            "wo": nrm((H, H)), "bo": jnp.zeros((1, H), jnp.float32),
            "ln1_g": jnp.ones((1, H), jnp.float32),
            "ln1_b": jnp.zeros((1, H), jnp.float32),
            "w1": nrm((H, F)), "b1": jnp.zeros((1, F), jnp.float32),
            "w2": nrm((F, H)), "b2": jnp.zeros((1, H), jnp.float32),
            "ln2_g": jnp.ones((1, H), jnp.float32),
            "ln2_b": jnp.zeros((1, H), jnp.float32),
        })
    return params


@jax.jit
def cuai_forward(params, input_ids, attention_mask):
    bf = jnp.bfloat16
    mask_f = attention_mask.astype(jnp.float32)                     # (B, S)

    # Embedding gather (glue); the embedding LayerNorm runs inside the kernel.
    we = params["word_emb"][input_ids]                              # (B, S, H)
    x_raw = (we + params["pos_emb"][None, :, :]
             + params["type_emb"][None, :, :]).reshape(BS, H)

    # Combined attention bias: block-diagonal segment mask + key-padding bias,
    # pre-tiled over heads along the sublane axis -> (NH*BS, BS).
    seg = jnp.repeat(jnp.arange(B), S)                              # (BS,)
    same_seg = seg[:, None] == seg[None, :]
    key_ok = mask_f.reshape(BS)[None, :] > 0.0
    attn_bias = jnp.where(same_seg & key_ok, 0.0, -1e9).astype(jnp.float32)
    attn_bias_tiled = jnp.tile(attn_bias, (NH, 1))                  # (NH*BS, BS)

    layers = params["layers"]
    # Fused QKV weights/biases and packed per-layer small parameters.
    wqkv = jnp.stack([jnp.concatenate([lp["wq"], lp["wk"], lp["wv"]], axis=1)
                      for lp in layers], axis=0).astype(bf)         # (L, H, 3H)
    bqkv = jnp.stack([jnp.concatenate([lp["bq"], lp["bk"], lp["bv"]], axis=1)
                      for lp in layers], axis=0)                    # (L, 1, 3H)
    wo = jnp.stack([lp["wo"] for lp in layers], axis=0).astype(bf)  # (L, H, H)
    w1 = jnp.stack([lp["w1"] for lp in layers], axis=0).astype(bf)  # (L, H, F)
    b1 = jnp.stack([lp["b1"] for lp in layers], axis=0)             # (L, 1, F)
    w2 = jnp.stack([lp["w2"] for lp in layers], axis=0).astype(bf)  # (L, F, H)
    vecs = jnp.stack([jnp.concatenate(
        [lp["bo"], lp["ln1_g"], lp["ln1_b"], lp["b2"], lp["ln2_g"], lp["ln2_b"]],
        axis=0) for lp in layers], axis=0)                          # (L, 6, H)
    misc = jnp.concatenate([params["emb_ln_g"], params["emb_ln_b"],
                            params["pooler_b"]], axis=0)            # (3, H)

    # Pad the classifier to a lane-dense 128-wide slab (sliced after the call).
    wfc_pad = jnp.zeros((H, PAD_OUT), bf).at[:, :NUM_CLASSES].set(
        params["fc_w"].astype(bf))
    bfc_pad = jnp.zeros((1, PAD_OUT), jnp.float32).at[:, :NUM_CLASSES].set(
        params["fc_b"])

    inputs = (x_raw, attn_bias_tiled, misc,
              wqkv, bqkv, wo, w1, b1, w2, vecs,
              params["pooler_w"].astype(bf), wfc_pad, bfc_pad)

    vmem = pl.BlockSpec(memory_space=pltpu.MemorySpace.VMEM)
    logits_pad = pl.pallas_call(
        fused_forward_kernel,
        out_shape=jax.ShapeDtypeStruct((OUT_ROWS, PAD_OUT), jnp.float32),
        in_specs=[vmem] * len(inputs),
        out_specs=vmem,
    )(*inputs)
    return logits_pad[:B, :NUM_CLASSES]


if __name__ == "__main__":
    key = jax.random.PRNGKey(0)
    k_param, k_ids = jax.random.split(key)

    params = init_params(k_param)
    input_ids = jax.random.randint(k_ids, (B, S), 0, V, dtype=jnp.int32)
    attention_mask = jnp.ones((B, S), jnp.int32).at[1, 6:].set(0)  # pad tail of seq 1

    logits = cuai_forward(params, input_ids, attention_mask)
    jax.block_until_ready(logits)
    assert logits.shape == (B, NUM_CLASSES) and logits.dtype == jnp.float32
    print("KERNEL_OK")
</pallas_src>

<mosaic_0001>
module attributes {stable_mosaic.version = 11 : i64} {
  func.func @fused_forward_kernel(%arg0: memref<16x64xf32, #tpu.memory_space<vmem>>, %arg1: memref<64x16xf32, #tpu.memory_space<vmem>>, %arg2: memref<3x64xf32, #tpu.memory_space<vmem>>, %arg3: memref<2x64x192xbf16, #tpu.memory_space<vmem>>, %arg4: memref<2x1x192xf32, #tpu.memory_space<vmem>>, %arg5: memref<2x64x64xbf16, #tpu.memory_space<vmem>>, %arg6: memref<2x64x128xbf16, #tpu.memory_space<vmem>>, %arg7: memref<2x1x128xf32, #tpu.memory_space<vmem>>, %arg8: memref<2x128x64xbf16, #tpu.memory_space<vmem>>, %arg9: memref<2x6x64xf32, #tpu.memory_space<vmem>>, %arg10: memref<64x64xbf16, #tpu.memory_space<vmem>>, %arg11: memref<64x128xbf16, #tpu.memory_space<vmem>>, %arg12: memref<1x128xf32, #tpu.memory_space<vmem>>, %arg13: memref<8x128xf32, #tpu.memory_space<vmem>>) attributes {dimension_semantics = [], scalar_prefetch = 0 : i64, scratch_operands = 0 : i64, tpu.core_type = #tpu.core_type<tc>} {
    %c0 = arith.constant 0 : index
    %c0_0 = arith.constant 0 : index
    %0 = vector.load %arg0[%c0, %c0_0] : memref<16x64xf32, #tpu.memory_space<vmem>>, vector<16x64xf32>
    %c0_1 = arith.constant 0 : index
    %c0_2 = arith.constant 0 : index
    %1 = vector.load %arg2[%c0_1, %c0_2] : memref<3x64xf32, #tpu.memory_space<vmem>>, vector<1x64xf32>
    %c1 = arith.constant 1 : index
    %c0_3 = arith.constant 0 : index
    %2 = vector.load %arg2[%c1, %c0_3] : memref<3x64xf32, #tpu.memory_space<vmem>>, vector<1x64xf32>
    %cst = arith.constant dense<0.000000e+00> : vector<16xf32>
    %3 = vector.multi_reduction <add>, %0, %cst [1] : vector<16x64xf32> to vector<16xf32>
    %4 = vector.shape_cast %3 : vector<16xf32> to vector<16x1xf32>
    %cst_4 = arith.constant 6.400000e+01 : f32
    %5 = vector.broadcast %cst_4 : f32 to vector<16x1xf32>
    %6 = arith.divf %4, %5 : vector<16x1xf32>
    %7 = vector.broadcast %6 : vector<16x1xf32> to vector<16x64xf32>
    %8 = arith.subf %0, %7 : vector<16x64xf32>
    %9 = arith.mulf %8, %8 : vector<16x64xf32>
    %cst_5 = arith.constant dense<0.000000e+00> : vector<16xf32>
    %10 = vector.multi_reduction <add>, %9, %cst_5 [1] : vector<16x64xf32> to vector<16xf32>
    %11 = vector.shape_cast %10 : vector<16xf32> to vector<16x1xf32>
    %cst_6 = arith.constant 6.400000e+01 : f32
    %12 = vector.broadcast %cst_6 : f32 to vector<16x1xf32>
    %13 = arith.divf %11, %12 : vector<16x1xf32>
    %14 = vector.broadcast %6 : vector<16x1xf32> to vector<16x64xf32>
    %15 = arith.subf %0, %14 : vector<16x64xf32>
    %cst_7 = arith.constant 9.99999974E-6 : f32
    %16 = vector.broadcast %cst_7 : f32 to vector<16x1xf32>
    %17 = arith.addf %13, %16 : vector<16x1xf32>
    %18 = math.rsqrt %17 : vector<16x1xf32>
    %19 = vector.broadcast %18 : vector<16x1xf32> to vector<16x64xf32>
    %20 = arith.mulf %15, %19 : vector<16x64xf32>
    %21 = vector.broadcast %1 : vector<1x64xf32> to vector<16x64xf32>
    %22 = arith.mulf %20, %21 : vector<16x64xf32>
    %23 = vector.broadcast %2 : vector<1x64xf32> to vector<16x64xf32>
    %24 = arith.addf %22, %23 : vector<16x64xf32>
    %c0_8 = arith.constant 0 : index
    %c0_9 = arith.constant 0 : index
    %25 = vector.load %arg1[%c0_8, %c0_9] : memref<64x16xf32, #tpu.memory_space<vmem>>, vector<64x16xf32>
    %c0_10 = arith.constant 0 : index
    %c0_11 = arith.constant 0 : index
    %c0_12 = arith.constant 0 : index
    %26 = vector.load %arg3[%c0_10, %c0_11, %c0_12] : memref<2x64x192xbf16, #tpu.memory_space<vmem>>, vector<1x64x192xbf16>
    %27 = vector.shape_cast %26 : vector<1x64x192xbf16> to vector<64x192xbf16>
    %c0_13 = arith.constant 0 : index
    %c0_14 = arith.constant 0 : index
    %c0_15 = arith.constant 0 : index
    %28 = vector.load %arg4[%c0_13, %c0_14, %c0_15] : memref<2x1x192xf32, #tpu.memory_space<vmem>>, vector<1x1x192xf32>
    %29 = vector.shape_cast %28 : vector<1x1x192xf32> to vector<1x192xf32>
    %c0_16 = arith.constant 0 : index
    %c0_17 = arith.constant 0 : index
    %c0_18 = arith.constant 0 : index
    %30 = vector.load %arg5[%c0_16, %c0_17, %c0_18] : memref<2x64x64xbf16, #tpu.memory_space<vmem>>, vector<1x64x64xbf16>
    %31 = vector.shape_cast %30 : vector<1x64x64xbf16> to vector<64x64xbf16>
    %c0_19 = arith.constant 0 : index
    %c0_20 = arith.constant 0 : index
    %c0_21 = arith.constant 0 : index
    %32 = vector.load %arg6[%c0_19, %c0_20, %c0_21] : memref<2x64x128xbf16, #tpu.memory_space<vmem>>, vector<1x64x128xbf16>
    %33 = vector.shape_cast %32 : vector<1x64x128xbf16> to vector<64x128xbf16>
    %c0_22 = arith.constant 0 : index
    %c0_23 = arith.constant 0 : index
    %c0_24 = arith.constant 0 : index
    %34 = vector.load %arg7[%c0_22, %c0_23, %c0_24] : memref<2x1x128xf32, #tpu.memory_space<vmem>>, vector<1x1x128xf32>
    %35 = vector.shape_cast %34 : vector<1x1x128xf32> to vector<1x128xf32>
    %c0_25 = arith.constant 0 : index
    %c0_26 = arith.constant 0 : index
    %c0_27 = arith.constant 0 : index
    %36 = vector.load %arg8[%c0_25, %c0_26, %c0_27] : memref<2x128x64xbf16, #tpu.memory_space<vmem>>, vector<1x128x64xbf16>
    %37 = vector.shape_cast %36 : vector<1x128x64xbf16> to vector<128x64xbf16>
    %c0_28 = arith.constant 0 : index
    %c0_29 = arith.constant 0 : index
    %c0_30 = arith.constant 0 : index
    %38 = vector.load %arg9[%c0_28, %c0_29, %c0_30] : memref<2x6x64xf32, #tpu.memory_space<vmem>>, vector<1x6x64xf32>
    %39 = vector.shape_cast %38 : vector<1x6x64xf32> to vector<6x64xf32>
    %40 = vector.extract_strided_slice %39 {offsets = [0, 0], sizes = [1, 64], strides = [1, 1]} : vector<6x64xf32> to vector<1x64xf32>
    %41 = vector.extract_strided_slice %39 {offsets = [1, 0], sizes = [1, 64], strides = [1, 1]} : vector<6x64xf32> to vector<1x64xf32>
    %42 = vector.extract_strided_slice %39 {offsets = [2, 0], sizes = [1, 64], strides = [1, 1]} : vector<6x64xf32> to vector<1x64xf32>
    %43 = vector.extract_strided_slice %39 {offsets = [3, 0], sizes = [1, 64], strides = [1, 1]} : vector<6x64xf32> to vector<1x64xf32>
    %44 = vector.extract_strided_slice %39 {offsets = [4, 0], sizes = [1, 64], strides = [1, 1]} : vector<6x64xf32> to vector<1x64xf32>
    %45 = vector.extract_strided_slice %39 {offsets = [5, 0], sizes = [1, 64], strides = [1, 1]} : vector<6x64xf32> to vector<1x64xf32>
    %46 = arith.truncf %24 : vector<16x64xf32> to vector<16x64xbf16>
    %cst_31 = arith.constant dense<0.000000e+00> : vector<16x192xf32>
    %47 = tpu.matmul %46, %27, %cst_31 {dimension_numbers = #tpu.dot_dimension_numbers<[1], [0], [0], [1], [0, 0, 1, 1], [], []>} : vector<16x64xbf16>, vector<64x192xbf16>, vector<16x192xf32> -> vector<16x192xf32>
    %48 = vector.broadcast %29 : vector<1x192xf32> to vector<16x192xf32>
    %49 = arith.addf %47, %48 : vector<16x192xf32>
    %50 = vector.extract_strided_slice %49 {offsets = [0, 0], sizes = [16, 64], strides = [1, 1]} : vector<16x192xf32> to vector<16x64xf32>
    %cst_32 = arith.constant 2.500000e-01 : f32
    %51 = vector.broadcast %cst_32 : f32 to vector<16x64xf32>
    %52 = arith.mulf %50, %51 : vector<16x64xf32>
    %53 = arith.truncf %52 : vector<16x64xf32> to vector<16x64xbf16>
    %54 = vector.extract_strided_slice %49 {offsets = [0, 64], sizes = [16, 64], strides = [1, 1]} : vector<16x192xf32> to vector<16x64xf32>
    %55 = arith.truncf %54 : vector<16x64xf32> to vector<16x64xbf16>
    %56 = vector.extract_strided_slice %49 {offsets = [0, 128], sizes = [16, 64], strides = [1, 1]} : vector<16x192xf32> to vector<16x64xf32>
    %57 = arith.truncf %56 : vector<16x64xf32> to vector<16x64xbf16>
    %58 = vector.extract_strided_slice %53 {offsets = [0, 0], sizes = [16, 16], strides = [1, 1]} : vector<16x64xbf16> to vector<16x16xbf16>
    %59 = vector.extract_strided_slice %55 {offsets = [0, 0], sizes = [16, 16], strides = [1, 1]} : vector<16x64xbf16> to vector<16x16xbf16>
    %cst_33 = arith.constant dense<0.000000e+00> : vector<16x16xf32>
    %60 = tpu.matmul %58, %59, %cst_33 {dimension_numbers = #tpu.dot_dimension_numbers<[1], [1], [0], [0], [0, 0, 1, 0], [], []>} : vector<16x16xbf16>, vector<16x16xbf16>, vector<16x16xf32> -> vector<16x16xf32>
    %61 = vector.extract_strided_slice %53 {offsets = [0, 16], sizes = [16, 16], strides = [1, 1]} : vector<16x64xbf16> to vector<16x16xbf16>
    %62 = vector.extract_strided_slice %55 {offsets = [0, 16], sizes = [16, 16], strides = [1, 1]} : vector<16x64xbf16> to vector<16x16xbf16>
    %cst_34 = arith.constant dense<0.000000e+00> : vector<16x16xf32>
    %63 = tpu.matmul %61, %62, %cst_34 {dimension_numbers = #tpu.dot_dimension_numbers<[1], [1], [0], [0], [0, 0, 1, 0], [], []>} : vector<16x16xbf16>, vector<16x16xbf16>, vector<16x16xf32> -> vector<16x16xf32>
    %64 = vector.extract_strided_slice %53 {offsets = [0, 32], sizes = [16, 16], strides = [1, 1]} : vector<16x64xbf16> to vector<16x16xbf16>
    %65 = vector.extract_strided_slice %55 {offsets = [0, 32], sizes = [16, 16], strides = [1, 1]} : vector<16x64xbf16> to vector<16x16xbf16>
    %cst_35 = arith.constant dense<0.000000e+00> : vector<16x16xf32>
    %66 = tpu.matmul %64, %65, %cst_35 {dimension_numbers = #tpu.dot_dimension_numbers<[1], [1], [0], [0], [0, 0, 1, 0], [], []>} : vector<16x16xbf16>, vector<16x16xbf16>, vector<16x16xf32> -> vector<16x16xf32>
    %67 = vector.extract_strided_slice %53 {offsets = [0, 48], sizes = [16, 16], strides = [1, 1]} : vector<16x64xbf16> to vector<16x16xbf16>
    %68 = vector.extract_strided_slice %55 {offsets = [0, 48], sizes = [16, 16], strides = [1, 1]} : vector<16x64xbf16> to vector<16x16xbf16>
    %cst_36 = arith.constant dense<0.000000e+00> : vector<16x16xf32>
    %69 = tpu.matmul %67, %68, %cst_36 {dimension_numbers = #tpu.dot_dimension_numbers<[1], [1], [0], [0], [0, 0, 1, 0], [], []>} : vector<16x16xbf16>, vector<16x16xbf16>, vector<16x16xf32> -> vector<16x16xf32>
    %70 = tpu.concatenate %60, %63, %66, %69 in 0 : vector<16x16xf32>, vector<16x16xf32>, vector<16x16xf32>, vector<16x16xf32> -> vector<64x16xf32>
    %71 = arith.addf %70, %25 : vector<64x16xf32>
    %cst_37 = arith.constant dense<0xFF800000> : vector<64xf32>
    %72 = vector.multi_reduction <maximumf>, %71, %cst_37 [1] : vector<64x16xf32> to vector<64xf32>
    %73 = vector.shape_cast %72 : vector<64xf32> to vector<64x1xf32>
    %74 = vector.broadcast %73 : vector<64x1xf32> to vector<64x16xf32>
    %75 = arith.subf %71, %74 : vector<64x16xf32>
    %76 = math.exp %75 : vector<64x16xf32>
    %cst_38 = arith.constant dense<0.000000e+00> : vector<64xf32>
    %77 = vector.multi_reduction <add>, %76, %cst_38 [1] : vector<64x16xf32> to vector<64xf32>
    %78 = vector.shape_cast %77 : vector<64xf32> to vector<64x1xf32>
    %79 = tpu.reciprocal %78 {approx = true} : vector<64x1xf32> -> vector<64x1xf32>
    %80 = vector.broadcast %79 : vector<64x1xf32> to vector<64x16xf32>
    %81 = arith.mulf %76, %80 : vector<64x16xf32>
    %82 = arith.truncf %81 : vector<64x16xf32> to vector<64x16xbf16>
    %83 = vector.extract_strided_slice %82 {offsets = [0, 0], sizes = [16, 16], strides = [1, 1]} : vector<64x16xbf16> to vector<16x16xbf16>
    %84 = vector.extract_strided_slice %57 {offsets = [0, 0], sizes = [16, 16], strides = [1, 1]} : vector<16x64xbf16> to vector<16x16xbf16>
    %cst_39 = arith.constant dense<0.000000e+00> : vector<16x16xf32>
    %85 = tpu.matmul %83, %84, %cst_39 {dimension_numbers = #tpu.dot_dimension_numbers<[1], [0], [0], [1], [0, 0, 1, 1], [], []>} : vector<16x16xbf16>, vector<16x16xbf16>, vector<16x16xf32> -> vector<16x16xf32>
    %86 = vector.extract_strided_slice %82 {offsets = [16, 0], sizes = [16, 16], strides = [1, 1]} : vector<64x16xbf16> to vector<16x16xbf16>
    %87 = vector.extract_strided_slice %57 {offsets = [0, 16], sizes = [16, 16], strides = [1, 1]} : vector<16x64xbf16> to vector<16x16xbf16>
    %cst_40 = arith.constant dense<0.000000e+00> : vector<16x16xf32>
    %88 = tpu.matmul %86, %87, %cst_40 {dimension_numbers = #tpu.dot_dimension_numbers<[1], [0], [0], [1], [0, 0, 1, 1], [], []>} : vector<16x16xbf16>, vector<16x16xbf16>, vector<16x16xf32> -> vector<16x16xf32>
    %89 = vector.extract_strided_slice %82 {offsets = [32, 0], sizes = [16, 16], strides = [1, 1]} : vector<64x16xbf16> to vector<16x16xbf16>
    %90 = vector.extract_strided_slice %57 {offsets = [0, 32], sizes = [16, 16], strides = [1, 1]} : vector<16x64xbf16> to vector<16x16xbf16>
    %cst_41 = arith.constant dense<0.000000e+00> : vector<16x16xf32>
    %91 = tpu.matmul %89, %90, %cst_41 {dimension_numbers = #tpu.dot_dimension_numbers<[1], [0], [0], [1], [0, 0, 1, 1], [], []>} : vector<16x16xbf16>, vector<16x16xbf16>, vector<16x16xf32> -> vector<16x16xf32>
    %92 = vector.extract_strided_slice %82 {offsets = [48, 0], sizes = [16, 16], strides = [1, 1]} : vector<64x16xbf16> to vector<16x16xbf16>
    %93 = vector.extract_strided_slice %57 {offsets = [0, 48], sizes = [16, 16], strides = [1, 1]} : vector<16x64xbf16> to vector<16x16xbf16>
    %cst_42 = arith.constant dense<0.000000e+00> : vector<16x16xf32>
    %94 = tpu.matmul %92, %93, %cst_42 {dimension_numbers = #tpu.dot_dimension_numbers<[1], [0], [0], [1], [0, 0, 1, 1], [], []>} : vector<16x16xbf16>, vector<16x16xbf16>, vector<16x16xf32> -> vector<16x16xf32>
    %95 = tpu.concatenate %85, %88, %91, %94 in 1 : vector<16x16xf32>, vector<16x16xf32>, vector<16x16xf32>, vector<16x16xf32> -> vector<16x64xf32>
    %96 = arith.truncf %95 : vector<16x64xf32> to vector<16x64xbf16>
    %cst_43 = arith.constant dense<0.000000e+00> : vector<16x64xf32>
    %97 = tpu.matmul %96, %31, %cst_43 {dimension_numbers = #tpu.dot_dimension_numbers<[1], [0], [0], [1], [0, 0, 1, 1], [], []>} : vector<16x64xbf16>, vector<64x64xbf16>, vector<16x64xf32> -> vector<16x64xf32>
    %98 = vector.broadcast %40 : vector<1x64xf32> to vector<16x64xf32>
    %99 = arith.addf %97, %98 : vector<16x64xf32>
    %100 = arith.addf %24, %99 : vector<16x64xf32>
    %cst_44 = arith.constant dense<0.000000e+00> : vector<16xf32>
    %101 = vector.multi_reduction <add>, %100, %cst_44 [1] : vector<16x64xf32> to vector<16xf32>
    %102 = vector.shape_cast %101 : vector<16xf32> to vector<16x1xf32>
    %cst_45 = arith.constant 6.400000e+01 : f32
    %103 = vector.broadcast %cst_45 : f32 to vector<16x1xf32>
    %104 = arith.divf %102, %103 : vector<16x1xf32>
    %105 = vector.broadcast %104 : vector<16x1xf32> to vector<16x64xf32>
    %106 = arith.subf %100, %105 : vector<16x64xf32>
    %107 = arith.mulf %106, %106 : vector<16x64xf32>
    %cst_46 = arith.constant dense<0.000000e+00> : vector<16xf32>
    %108 = vector.multi_reduction <add>, %107, %cst_46 [1] : vector<16x64xf32> to vector<16xf32>
    %109 = vector.shape_cast %108 : vector<16xf32> to vector<16x1xf32>
    %cst_47 = arith.constant 6.400000e+01 : f32
    %110 = vector.broadcast %cst_47 : f32 to vector<16x1xf32>
    %111 = arith.divf %109, %110 : vector<16x1xf32>
    %112 = vector.broadcast %104 : vector<16x1xf32> to vector<16x64xf32>
    %113 = arith.subf %100, %112 : vector<16x64xf32>
    %cst_48 = arith.constant 9.99999974E-6 : f32
    %114 = vector.broadcast %cst_48 : f32 to vector<16x1xf32>
    %115 = arith.addf %111, %114 : vector<16x1xf32>
    %116 = math.rsqrt %115 : vector<16x1xf32>
    %117 = vector.broadcast %116 : vector<16x1xf32> to vector<16x64xf32>
    %118 = arith.mulf %113, %117 : vector<16x64xf32>
    %119 = vector.broadcast %41 : vector<1x64xf32> to vector<16x64xf32>
    %120 = arith.mulf %118, %119 : vector<16x64xf32>
    %121 = vector.broadcast %42 : vector<1x64xf32> to vector<16x64xf32>
    %122 = arith.addf %120, %121 : vector<16x64xf32>
    %123 = arith.truncf %122 : vector<16x64xf32> to vector<16x64xbf16>
    %cst_49 = arith.constant dense<0.000000e+00> : vector<16x128xf32>
    %124 = tpu.matmul %123, %33, %cst_49 {dimension_numbers = #tpu.dot_dimension_numbers<[1], [0], [0], [1], [0, 0, 1, 1], [], []>} : vector<16x64xbf16>, vector<64x128xbf16>, vector<16x128xf32> -> vector<16x128xf32>
    %125 = vector.broadcast %35 : vector<1x128xf32> to vector<16x128xf32>
    %126 = arith.addf %124, %125 : vector<16x128xf32>
    %127 = arith.mulf %126, %126 : vector<16x128xf32>
    %128 = arith.mulf %126, %127 : vector<16x128xf32>
    %cst_50 = arith.constant 4.471500e-02 : f32
    %129 = vector.broadcast %cst_50 : f32 to vector<16x128xf32>
    %130 = arith.mulf %129, %128 : vector<16x128xf32>
    %131 = arith.addf %126, %130 : vector<16x128xf32>
    %cst_51 = arith.constant 0.797884583 : f32
    %132 = vector.broadcast %cst_51 : f32 to vector<16x128xf32>
    %133 = arith.mulf %132, %131 : vector<16x128xf32>
    %134 = math.tanh %133 : vector<16x128xf32>
    %cst_52 = arith.constant 1.000000e+00 : f32
    %135 = vector.broadcast %cst_52 : f32 to vector<16x128xf32>
    %136 = arith.addf %135, %134 : vector<16x128xf32>
    %cst_53 = arith.constant 5.000000e-01 : f32
    %137 = vector.broadcast %cst_53 : f32 to vector<16x128xf32>
    %138 = arith.mulf %137, %136 : vector<16x128xf32>
    %139 = arith.mulf %126, %138 : vector<16x128xf32>
    %140 = arith.truncf %139 : vector<16x128xf32> to vector<16x128xbf16>
    %cst_54 = arith.constant dense<0.000000e+00> : vector<16x64xf32>
    %141 = tpu.matmul %140, %37, %cst_54 {dimension_numbers = #tpu.dot_dimension_numbers<[1], [0], [0], [1], [0, 0, 1, 1], [], []>} : vector<16x128xbf16>, vector<128x64xbf16>, vector<16x64xf32> -> vector<16x64xf32>
    %142 = vector.broadcast %43 : vector<1x64xf32> to vector<16x64xf32>
    %143 = arith.addf %141, %142 : vector<16x64xf32>
    %144 = arith.addf %122, %143 : vector<16x64xf32>
    %cst_55 = arith.constant dense<0.000000e+00> : vector<16xf32>
    %145 = vector.multi_reduction <add>, %144, %cst_55 [1] : vector<16x64xf32> to vector<16xf32>
    %146 = vector.shape_cast %145 : vector<16xf32> to vector<16x1xf32>
    %cst_56 = arith.constant 6.400000e+01 : f32
    %147 = vector.broadcast %cst_56 : f32 to vector<16x1xf32>
    %148 = arith.divf %146, %147 : vector<16x1xf32>
    %149 = vector.broadcast %148 : vector<16x1xf32> to vector<16x64xf32>
    %150 = arith.subf %144, %149 : vector<16x64xf32>
    %151 = arith.mulf %150, %150 : vector<16x64xf32>
    %cst_57 = arith.constant dense<0.000000e+00> : vector<16xf32>
    %152 = vector.multi_reduction <add>, %151, %cst_57 [1] : vector<16x64xf32> to vector<16xf32>
    %153 = vector.shape_cast %152 : vector<16xf32> to vector<16x1xf32>
    %cst_58 = arith.constant 6.400000e+01 : f32
    %154 = vector.broadcast %cst_58 : f32 to vector<16x1xf32>
    %155 = arith.divf %153, %154 : vector<16x1xf32>
    %156 = vector.broadcast %148 : vector<16x1xf32> to vector<16x64xf32>
    %157 = arith.subf %144, %156 : vector<16x64xf32>
    %cst_59 = arith.constant 9.99999974E-6 : f32
    %158 = vector.broadcast %cst_59 : f32 to vector<16x1xf32>
    %159 = arith.addf %155, %158 : vector<16x1xf32>
    %160 = math.rsqrt %159 : vector<16x1xf32>
    %161 = vector.broadcast %160 : vector<16x1xf32> to vector<16x64xf32>
    %162 = arith.mulf %157, %161 : vector<16x64xf32>
    %163 = vector.broadcast %44 : vector<1x64xf32> to vector<16x64xf32>
    %164 = arith.mulf %162, %163 : vector<16x64xf32>
    %165 = vector.broadcast %45 : vector<1x64xf32> to vector<16x64xf32>
    %166 = arith.addf %164, %165 : vector<16x64xf32>
    %c1_60 = arith.constant 1 : index
    %c0_61 = arith.constant 0 : index
    %c0_62 = arith.constant 0 : index
    %167 = vector.load %arg3[%c1_60, %c0_61, %c0_62] : memref<2x64x192xbf16, #tpu.memory_space<vmem>>, vector<1x64x192xbf16>
    %168 = vector.shape_cast %167 : vector<1x64x192xbf16> to vector<64x192xbf16>
    %c1_63 = arith.constant 1 : index
    %c0_64 = arith.constant 0 : index
    %c0_65 = arith.constant 0 : index
    %169 = vector.load %arg4[%c1_63, %c0_64, %c0_65] : memref<2x1x192xf32, #tpu.memory_space<vmem>>, vector<1x1x192xf32>
    %170 = vector.shape_cast %169 : vector<1x1x192xf32> to vector<1x192xf32>
    %c1_66 = arith.constant 1 : index
    %c0_67 = arith.constant 0 : index
    %c0_68 = arith.constant 0 : index
    %171 = vector.load %arg5[%c1_66, %c0_67, %c0_68] : memref<2x64x64xbf16, #tpu.memory_space<vmem>>, vector<1x64x64xbf16>
    %172 = vector.shape_cast %171 : vector<1x64x64xbf16> to vector<64x64xbf16>
    %c1_69 = arith.constant 1 : index
    %c0_70 = arith.constant 0 : index
    %c0_71 = arith.constant 0 : index
    %173 = vector.load %arg6[%c1_69, %c0_70, %c0_71] : memref<2x64x128xbf16, #tpu.memory_space<vmem>>, vector<1x64x128xbf16>
    %174 = vector.shape_cast %173 : vector<1x64x128xbf16> to vector<64x128xbf16>
    %c1_72 = arith.constant 1 : index
    %c0_73 = arith.constant 0 : index
    %c0_74 = arith.constant 0 : index
    %175 = vector.load %arg7[%c1_72, %c0_73, %c0_74] : memref<2x1x128xf32, #tpu.memory_space<vmem>>, vector<1x1x128xf32>
    %176 = vector.shape_cast %175 : vector<1x1x128xf32> to vector<1x128xf32>
    %c1_75 = arith.constant 1 : index
    %c0_76 = arith.constant 0 : index
    %c0_77 = arith.constant 0 : index
    %177 = vector.load %arg8[%c1_75, %c0_76, %c0_77] : memref<2x128x64xbf16, #tpu.memory_space<vmem>>, vector<1x128x64xbf16>
    %178 = vector.shape_cast %177 : vector<1x128x64xbf16> to vector<128x64xbf16>
    %c1_78 = arith.constant 1 : index
    %c0_79 = arith.constant 0 : index
    %c0_80 = arith.constant 0 : index
    %179 = vector.load %arg9[%c1_78, %c0_79, %c0_80] : memref<2x6x64xf32, #tpu.memory_space<vmem>>, vector<1x6x64xf32>
    %180 = vector.shape_cast %179 : vector<1x6x64xf32> to vector<6x64xf32>
    %181 = vector.extract_strided_slice %180 {offsets = [0, 0], sizes = [1, 64], strides = [1, 1]} : vector<6x64xf32> to vector<1x64xf32>
    %182 = vector.extract_strided_slice %180 {offsets = [1, 0], sizes = [1, 64], strides = [1, 1]} : vector<6x64xf32> to vector<1x64xf32>
    %183 = vector.extract_strided_slice %180 {offsets = [2, 0], sizes = [1, 64], strides = [1, 1]} : vector<6x64xf32> to vector<1x64xf32>
    %184 = vector.extract_strided_slice %180 {offsets = [3, 0], sizes = [1, 64], strides = [1, 1]} : vector<6x64xf32> to vector<1x64xf32>
    %185 = vector.extract_strided_slice %180 {offsets = [4, 0], sizes = [1, 64], strides = [1, 1]} : vector<6x64xf32> to vector<1x64xf32>
    %186 = vector.extract_strided_slice %180 {offsets = [5, 0], sizes = [1, 64], strides = [1, 1]} : vector<6x64xf32> to vector<1x64xf32>
    %187 = arith.truncf %166 : vector<16x64xf32> to vector<16x64xbf16>
    %cst_81 = arith.constant dense<0.000000e+00> : vector<16x192xf32>
    %188 = tpu.matmul %187, %168, %cst_81 {dimension_numbers = #tpu.dot_dimension_numbers<[1], [0], [0], [1], [0, 0, 1, 1], [], []>} : vector<16x64xbf16>, vector<64x192xbf16>, vector<16x192xf32> -> vector<16x192xf32>
    %189 = vector.broadcast %170 : vector<1x192xf32> to vector<16x192xf32>
    %190 = arith.addf %188, %189 : vector<16x192xf32>
    %191 = vector.extract_strided_slice %190 {offsets = [0, 0], sizes = [16, 64], strides = [1, 1]} : vector<16x192xf32> to vector<16x64xf32>
    %cst_82 = arith.constant 2.500000e-01 : f32
    %192 = vector.broadcast %cst_82 : f32 to vector<16x64xf32>
    %193 = arith.mulf %191, %192 : vector<16x64xf32>
    %194 = arith.truncf %193 : vector<16x64xf32> to vector<16x64xbf16>
    %195 = vector.extract_strided_slice %190 {offsets = [0, 64], sizes = [16, 64], strides = [1, 1]} : vector<16x192xf32> to vector<16x64xf32>
    %196 = arith.truncf %195 : vector<16x64xf32> to vector<16x64xbf16>
    %197 = vector.extract_strided_slice %190 {offsets = [0, 128], sizes = [16, 64], strides = [1, 1]} : vector<16x192xf32> to vector<16x64xf32>
    %198 = arith.truncf %197 : vector<16x64xf32> to vector<16x64xbf16>
    %199 = vector.extract_strided_slice %194 {offsets = [0, 0], sizes = [16, 16], strides = [1, 1]} : vector<16x64xbf16> to vector<16x16xbf16>
    %200 = vector.extract_strided_slice %196 {offsets = [0, 0], sizes = [16, 16], strides = [1, 1]} : vector<16x64xbf16> to vector<16x16xbf16>
    %cst_83 = arith.constant dense<0.000000e+00> : vector<16x16xf32>
    %201 = tpu.matmul %199, %200, %cst_83 {dimension_numbers = #tpu.dot_dimension_numbers<[1], [1], [0], [0], [0, 0, 1, 0], [], []>} : vector<16x16xbf16>, vector<16x16xbf16>, vector<16x16xf32> -> vector<16x16xf32>
    %202 = vector.extract_strided_slice %194 {offsets = [0, 16], sizes = [16, 16], strides = [1, 1]} : vector<16x64xbf16> to vector<16x16xbf16>
    %203 = vector.extract_strided_slice %196 {offsets = [0, 16], sizes = [16, 16], strides = [1, 1]} : vector<16x64xbf16> to vector<16x16xbf16>
    %cst_84 = arith.constant dense<0.000000e+00> : vector<16x16xf32>
    %204 = tpu.matmul %202, %203, %cst_84 {dimension_numbers = #tpu.dot_dimension_numbers<[1], [1], [0], [0], [0, 0, 1, 0], [], []>} : vector<16x16xbf16>, vector<16x16xbf16>, vector<16x16xf32> -> vector<16x16xf32>
    %205 = vector.extract_strided_slice %194 {offsets = [0, 32], sizes = [16, 16], strides = [1, 1]} : vector<16x64xbf16> to vector<16x16xbf16>
    %206 = vector.extract_strided_slice %196 {offsets = [0, 32], sizes = [16, 16], strides = [1, 1]} : vector<16x64xbf16> to vector<16x16xbf16>
    %cst_85 = arith.constant dense<0.000000e+00> : vector<16x16xf32>
    %207 = tpu.matmul %205, %206, %cst_85 {dimension_numbers = #tpu.dot_dimension_numbers<[1], [1], [0], [0], [0, 0, 1, 0], [], []>} : vector<16x16xbf16>, vector<16x16xbf16>, vector<16x16xf32> -> vector<16x16xf32>
    %208 = vector.extract_strided_slice %194 {offsets = [0, 48], sizes = [16, 16], strides = [1, 1]} : vector<16x64xbf16> to vector<16x16xbf16>
    %209 = vector.extract_strided_slice %196 {offsets = [0, 48], sizes = [16, 16], strides = [1, 1]} : vector<16x64xbf16> to vector<16x16xbf16>
    %cst_86 = arith.constant dense<0.000000e+00> : vector<16x16xf32>
    %210 = tpu.matmul %208, %209, %cst_86 {dimension_numbers = #tpu.dot_dimension_numbers<[1], [1], [0], [0], [0, 0, 1, 0], [], []>} : vector<16x16xbf16>, vector<16x16xbf16>, vector<16x16xf32> -> vector<16x16xf32>
    %211 = tpu.concatenate %201, %204, %207, %210 in 0 : vector<16x16xf32>, vector<16x16xf32>, vector<16x16xf32>, vector<16x16xf32> -> vector<64x16xf32>
    %212 = arith.addf %211, %25 : vector<64x16xf32>
    %cst_87 = arith.constant dense<0xFF800000> : vector<64xf32>
    %213 = vector.multi_reduction <maximumf>, %212, %cst_87 [1] : vector<64x16xf32> to vector<64xf32>
    %214 = vector.shape_cast %213 : vector<64xf32> to vector<64x1xf32>
    %215 = vector.broadcast %214 : vector<64x1xf32> to vector<64x16xf32>
    %216 = arith.subf %212, %215 : vector<64x16xf32>
    %217 = math.exp %216 : vector<64x16xf32>
    %cst_88 = arith.constant dense<0.000000e+00> : vector<64xf32>
    %218 = vector.multi_reduction <add>, %217, %cst_88 [1] : vector<64x16xf32> to vector<64xf32>
    %219 = vector.shape_cast %218 : vector<64xf32> to vector<64x1xf32>
    %220 = tpu.reciprocal %219 {approx = true} : vector<64x1xf32> -> vector<64x1xf32>
    %221 = vector.broadcast %220 : vector<64x1xf32> to vector<64x16xf32>
    %222 = arith.mulf %217, %221 : vector<64x16xf32>
    %223 = arith.truncf %222 : vector<64x16xf32> to vector<64x16xbf16>
    %224 = vector.extract_strided_slice %223 {offsets = [0, 0], sizes = [16, 16], strides = [1, 1]} : vector<64x16xbf16> to vector<16x16xbf16>
    %225 = vector.extract_strided_slice %198 {offsets = [0, 0], sizes = [16, 16], strides = [1, 1]} : vector<16x64xbf16> to vector<16x16xbf16>
    %cst_89 = arith.constant dense<0.000000e+00> : vector<16x16xf32>
    %226 = tpu.matmul %224, %225, %cst_89 {dimension_numbers = #tpu.dot_dimension_numbers<[1], [0], [0], [1], [0, 0, 1, 1], [], []>} : vector<16x16xbf16>, vector<16x16xbf16>, vector<16x16xf32> -> vector<16x16xf32>
    %227 = vector.extract_strided_slice %223 {offsets = [16, 0], sizes = [16, 16], strides = [1, 1]} : vector<64x16xbf16> to vector<16x16xbf16>
    %228 = vector.extract_strided_slice %198 {offsets = [0, 16], sizes = [16, 16], strides = [1, 1]} : vector<16x64xbf16> to vector<16x16xbf16>
    %cst_90 = arith.constant dense<0.000000e+00> : vector<16x16xf32>
    %229 = tpu.matmul %227, %228, %cst_90 {dimension_numbers = #tpu.dot_dimension_numbers<[1], [0], [0], [1], [0, 0, 1, 1], [], []>} : vector<16x16xbf16>, vector<16x16xbf16>, vector<16x16xf32> -> vector<16x16xf32>
    %230 = vector.extract_strided_slice %223 {offsets = [32, 0], sizes = [16, 16], strides = [1, 1]} : vector<64x16xbf16> to vector<16x16xbf16>
    %231 = vector.extract_strided_slice %198 {offsets = [0, 32], sizes = [16, 16], strides = [1, 1]} : vector<16x64xbf16> to vector<16x16xbf16>
    %cst_91 = arith.constant dense<0.000000e+00> : vector<16x16xf32>
    %232 = tpu.matmul %230, %231, %cst_91 {dimension_numbers = #tpu.dot_dimension_numbers<[1], [0], [0], [1], [0, 0, 1, 1], [], []>} : vector<16x16xbf16>, vector<16x16xbf16>, vector<16x16xf32> -> vector<16x16xf32>
    %233 = vector.extract_strided_slice %223 {offsets = [48, 0], sizes = [16, 16], strides = [1, 1]} : vector<64x16xbf16> to vector<16x16xbf16>
    %234 = vector.extract_strided_slice %198 {offsets = [0, 48], sizes = [16, 16], strides = [1, 1]} : vector<16x64xbf16> to vector<16x16xbf16>
    %cst_92 = arith.constant dense<0.000000e+00> : vector<16x16xf32>
    %235 = tpu.matmul %233, %234, %cst_92 {dimension_numbers = #tpu.dot_dimension_numbers<[1], [0], [0], [1], [0, 0, 1, 1], [], []>} : vector<16x16xbf16>, vector<16x16xbf16>, vector<16x16xf32> -> vector<16x16xf32>
    %236 = tpu.concatenate %226, %229, %232, %235 in 1 : vector<16x16xf32>, vector<16x16xf32>, vector<16x16xf32>, vector<16x16xf32> -> vector<16x64xf32>
    %237 = arith.truncf %236 : vector<16x64xf32> to vector<16x64xbf16>
    %cst_93 = arith.constant dense<0.000000e+00> : vector<16x64xf32>
    %238 = tpu.matmul %237, %172, %cst_93 {dimension_numbers = #tpu.dot_dimension_numbers<[1], [0], [0], [1], [0, 0, 1, 1], [], []>} : vector<16x64xbf16>, vector<64x64xbf16>, vector<16x64xf32> -> vector<16x64xf32>
    %239 = vector.broadcast %181 : vector<1x64xf32> to vector<16x64xf32>
    %240 = arith.addf %238, %239 : vector<16x64xf32>
    %241 = arith.addf %166, %240 : vector<16x64xf32>
    %cst_94 = arith.constant dense<0.000000e+00> : vector<16xf32>
    %242 = vector.multi_reduction <add>, %241, %cst_94 [1] : vector<16x64xf32> to vector<16xf32>
    %243 = vector.shape_cast %242 : vector<16xf32> to vector<16x1xf32>
    %cst_95 = arith.constant 6.400000e+01 : f32
    %244 = vector.broadcast %cst_95 : f32 to vector<16x1xf32>
    %245 = arith.divf %243, %244 : vector<16x1xf32>
    %246 = vector.broadcast %245 : vector<16x1xf32> to vector<16x64xf32>
    %247 = arith.subf %241, %246 : vector<16x64xf32>
    %248 = arith.mulf %247, %247 : vector<16x64xf32>
    %cst_96 = arith.constant dense<0.000000e+00> : vector<16xf32>
    %249 = vector.multi_reduction <add>, %248, %cst_96 [1] : vector<16x64xf32> to vector<16xf32>
    %250 = vector.shape_cast %249 : vector<16xf32> to vector<16x1xf32>
    %cst_97 = arith.constant 6.400000e+01 : f32
    %251 = vector.broadcast %cst_97 : f32 to vector<16x1xf32>
    %252 = arith.divf %250, %251 : vector<16x1xf32>
    %253 = vector.broadcast %245 : vector<16x1xf32> to vector<16x64xf32>
    %254 = arith.subf %241, %253 : vector<16x64xf32>
    %cst_98 = arith.constant 9.99999974E-6 : f32
    %255 = vector.broadcast %cst_98 : f32 to vector<16x1xf32>
    %256 = arith.addf %252, %255 : vector<16x1xf32>
    %257 = math.rsqrt %256 : vector<16x1xf32>
    %258 = vector.broadcast %257 : vector<16x1xf32> to vector<16x64xf32>
    %259 = arith.mulf %254, %258 : vector<16x64xf32>
    %260 = vector.broadcast %182 : vector<1x64xf32> to vector<16x64xf32>
    %261 = arith.mulf %259, %260 : vector<16x64xf32>
    %262 = vector.broadcast %183 : vector<1x64xf32> to vector<16x64xf32>
    %263 = arith.addf %261, %262 : vector<16x64xf32>
    %264 = arith.truncf %263 : vector<16x64xf32> to vector<16x64xbf16>
    %cst_99 = arith.constant dense<0.000000e+00> : vector<16x128xf32>
    %265 = tpu.matmul %264, %174, %cst_99 {dimension_numbers = #tpu.dot_dimension_numbers<[1], [0], [0], [1], [0, 0, 1, 1], [], []>} : vector<16x64xbf16>, vector<64x128xbf16>, vector<16x128xf32> -> vector<16x128xf32>
    %266 = vector.broadcast %176 : vector<1x128xf32> to vector<16x128xf32>
    %267 = arith.addf %265, %266 : vector<16x128xf32>
    %268 = arith.mulf %267, %267 : vector<16x128xf32>
    %269 = arith.mulf %267, %268 : vector<16x128xf32>
    %cst_100 = arith.constant 4.471500e-02 : f32
    %270 = vector.broadcast %cst_100 : f32 to vector<16x128xf32>
    %271 = arith.mulf %270, %269 : vector<16x128xf32>
    %272 = arith.addf %267, %271 : vector<16x128xf32>
    %cst_101 = arith.constant 0.797884583 : f32
    %273 = vector.broadcast %cst_101 : f32 to vector<16x128xf32>
    %274 = arith.mulf %273, %272 : vector<16x128xf32>
    %275 = math.tanh %274 : vector<16x128xf32>
    %cst_102 = arith.constant 1.000000e+00 : f32
    %276 = vector.broadcast %cst_102 : f32 to vector<16x128xf32>
    %277 = arith.addf %276, %275 : vector<16x128xf32>
    %cst_103 = arith.constant 5.000000e-01 : f32
    %278 = vector.broadcast %cst_103 : f32 to vector<16x128xf32>
    %279 = arith.mulf %278, %277 : vector<16x128xf32>
    %280 = arith.mulf %267, %279 : vector<16x128xf32>
    %281 = arith.truncf %280 : vector<16x128xf32> to vector<16x128xbf16>
    %cst_104 = arith.constant dense<0.000000e+00> : vector<16x64xf32>
    %282 = tpu.matmul %281, %178, %cst_104 {dimension_numbers = #tpu.dot_dimension_numbers<[1], [0], [0], [1], [0, 0, 1, 1], [], []>} : vector<16x128xbf16>, vector<128x64xbf16>, vector<16x64xf32> -> vector<16x64xf32>
    %283 = vector.broadcast %184 : vector<1x64xf32> to vector<16x64xf32>
    %284 = arith.addf %282, %283 : vector<16x64xf32>
    %285 = arith.addf %263, %284 : vector<16x64xf32>
    %cst_105 = arith.constant dense<0.000000e+00> : vector<16xf32>
    %286 = vector.multi_reduction <add>, %285, %cst_105 [1] : vector<16x64xf32> to vector<16xf32>
    %287 = vector.shape_cast %286 : vector<16xf32> to vector<16x1xf32>
    %cst_106 = arith.constant 6.400000e+01 : f32
    %288 = vector.broadcast %cst_106 : f32 to vector<16x1xf32>
    %289 = arith.divf %287, %288 : vector<16x1xf32>
    %290 = vector.broadcast %289 : vector<16x1xf32> to vector<16x64xf32>
    %291 = arith.subf %285, %290 : vector<16x64xf32>
    %292 = arith.mulf %291, %291 : vector<16x64xf32>
    %cst_107 = arith.constant dense<0.000000e+00> : vector<16xf32>
    %293 = vector.multi_reduction <add>, %292, %cst_107 [1] : vector<16x64xf32> to vector<16xf32>
    %294 = vector.shape_cast %293 : vector<16xf32> to vector<16x1xf32>
    %cst_108 = arith.constant 6.400000e+01 : f32
    %295 = vector.broadcast %cst_108 : f32 to vector<16x1xf32>
    %296 = arith.divf %294, %295 : vector<16x1xf32>
    %297 = vector.broadcast %289 : vector<16x1xf32> to vector<16x64xf32>
    %298 = arith.subf %285, %297 : vector<16x64xf32>
    %cst_109 = arith.constant 9.99999974E-6 : f32
    %299 = vector.broadcast %cst_109 : f32 to vector<16x1xf32>
    %300 = arith.addf %296, %299 : vector<16x1xf32>
    %301 = math.rsqrt %300 : vector<16x1xf32>
    %302 = vector.broadcast %301 : vector<16x1xf32> to vector<16x64xf32>
    %303 = arith.mulf %298, %302 : vector<16x64xf32>
    %304 = vector.broadcast %185 : vector<1x64xf32> to vector<16x64xf32>
    %305 = arith.mulf %303, %304 : vector<16x64xf32>
    %306 = vector.broadcast %186 : vector<1x64xf32> to vector<16x64xf32>
    %307 = arith.addf %305, %306 : vector<16x64xf32>
    %308 = vector.shape_cast %307 : vector<16x64xf32> to vector<2x8x64xf32>
    %309 = vector.extract_strided_slice %308 {offsets = [0, 0, 0], sizes = [2, 1, 64], strides = [1, 1, 1]} : vector<2x8x64xf32> to vector<2x1x64xf32>
    %310 = vector.shape_cast %309 : vector<2x1x64xf32> to vector<2x64xf32>
    %311 = arith.truncf %310 : vector<2x64xf32> to vector<2x64xbf16>
    %c0_110 = arith.constant 0 : index
    %c0_111 = arith.constant 0 : index
    %312 = vector.load %arg10[%c0_110, %c0_111] : memref<64x64xbf16, #tpu.memory_space<vmem>>, vector<64x64xbf16>
    %cst_112 = arith.constant dense<0.000000e+00> : vector<2x64xf32>
    %313 = tpu.matmul %311, %312, %cst_112 {dimension_numbers = #tpu.dot_dimension_numbers<[1], [0], [0], [1], [0, 0, 1, 1], [], []>} : vector<2x64xbf16>, vector<64x64xbf16>, vector<2x64xf32> -> vector<2x64xf32>
    %c2 = arith.constant 2 : index
    %c0_113 = arith.constant 0 : index
    %314 = vector.load %arg2[%c2, %c0_113] : memref<3x64xf32, #tpu.memory_space<vmem>>, vector<1x64xf32>
    %315 = vector.broadcast %314 : vector<1x64xf32> to vector<2x64xf32>
    %316 = arith.addf %313, %315 : vector<2x64xf32>
    %317 = math.tanh %316 : vector<2x64xf32>
    %318 = arith.truncf %317 : vector<2x64xf32> to vector<2x64xbf16>
    %c0_114 = arith.constant 0 : index
    %c0_115 = arith.constant 0 : index
    %319 = vector.load %arg11[%c0_114, %c0_115] : memref<64x128xbf16, #tpu.memory_space<vmem>>, vector<64x128xbf16>
    %cst_116 = arith.constant dense<0.000000e+00> : vector<2x128xf32>
    %320 = tpu.matmul %318, %319, %cst_116 {dimension_numbers = #tpu.dot_dimension_numbers<[1], [0], [0], [1], [0, 0, 1, 1], [], []>} : vector<2x64xbf16>, vector<64x128xbf16>, vector<2x128xf32> -> vector<2x128xf32>
    %c0_117 = arith.constant 0 : index
    %c0_118 = arith.constant 0 : index
    %321 = vector.load %arg12[%c0_117, %c0_118] : memref<1x128xf32, #tpu.memory_space<vmem>>, vector<1x128xf32>
    %322 = vector.broadcast %321 : vector<1x128xf32> to vector<2x128xf32>
    %323 = arith.addf %320, %322 : vector<2x128xf32>
    %cst_119 = arith.constant 0.000000e+00 : f32
    %324 = vector.broadcast %cst_119 : f32 to vector<6x128xf32>
    %325 = tpu.concatenate %323, %324 in 0 : vector<2x128xf32>, vector<6x128xf32> -> vector<8x128xf32>
    %c0_120 = arith.constant 0 : index
    %c0_121 = arith.constant 0 : index
    %326 = vector.load %arg13[%c0_120, %c0_121] : memref<8x128xf32, #tpu.memory_space<vmem>>, vector<8x128xf32>
    tpu.vector_store %arg13[%c0_120, %c0_121], %325 {strides = array<i32>} : memref<8x128xf32, #tpu.memory_space<vmem>>, vector<8x128xf32>,
    return
  }
}

</mosaic_0001>

<llo_original>
// kernel: cuai_forward.1
$region0: #{cuai_forward.1}
  #allocation0 [shape = 'u32[]', space=smem, size = 0x4, offset = 0x4, fixed_abs, tag = 'smem constant byte address 0x4 - core index']
  #allocation1 [shape = 'u32[144,128]{1,0:T(1,128)}', space=vmem, size = 0x12000, scoped, tag = 'internal scratch']
  %s0 = inlined_call_operand.vmem [shape: f32[16,64], index: 0, kind: input, shape index: {}]
  %s1 = inlined_call_operand.vmem [shape: f32[64,16], index: 1, kind: input, shape index: {}]
  %s2 = inlined_call_operand.vmem [shape: f32[3,64], index: 2, kind: input, shape index: {}]
  %s3 = inlined_call_operand.vmem [shape: bf16[2,64,192], index: 3, kind: input, shape index: {}]
  %s4 = inlined_call_operand.vmem [shape: f32[2,1,192], index: 4, kind: input, shape index: {}]
  %s5 = inlined_call_operand.vmem [shape: bf16[2,64,64], index: 5, kind: input, shape index: {}]
  %s6 = inlined_call_operand.vmem [shape: bf16[2,64,128], index: 6, kind: input, shape index: {}]
  %s7 = inlined_call_operand.vmem [shape: f32[2,1,128], index: 7, kind: input, shape index: {}]
  %s8 = inlined_call_operand.vmem [shape: bf16[2,128,64], index: 8, kind: input, shape index: {}]
  %s9 = inlined_call_operand.vmem [shape: f32[2,6,64], index: 9, kind: input, shape index: {}]
  %s10 = inlined_call_operand.vmem [shape: bf16[64,64], index: 10, kind: input, shape index: {}]
  %s11 = inlined_call_operand.vmem [shape: bf16[64,128], index: 11, kind: input, shape index: {}]
  %s12 = inlined_call_operand.vmem [shape: f32[1,128], index: 12, kind: input, shape index: {}]
  %s13 = inlined_call_operand.vmem [shape: f32[8,128], index: 13, kind: output, shape index: {}]
  %s14 = sld [smem:[#allocation0]]
  $region62: #{cuai_forward.1} parent=0
    _
  %s16 = ssub.s32 1, %s14
  %s17 = scalar_select 0, %s16, %s14
  // Predicated region
  $region2: #{cuai_forward.1} parent=0 // pred_check
    _
  $region3: #{cuai_forward.1} parent=0 // pred_check_branch
    %19 = sbr.rel (0) target = $region5
  $region4: #{cuai_forward.1} parent=0 // pred_region
    _
  $region5: #{cuai_forward.1} parent=0 // pred_fallthru
    _
  // Predicated region
  $region6: #{cuai_forward.1} parent=0 // pred_check
    _
  $region7: #{cuai_forward.1} parent=0 // pred_check_branch
    %21 = sbr.rel (0) target = $region9
  $region8: #{cuai_forward.1} parent=0 // pred_region
    _
  $region9: #{cuai_forward.1} parent=0 // pred_fallthru
    _
  // Predicated region
  $region10: #{cuai_forward.1} parent=0 // pred_check
    _
  $region11: #{cuai_forward.1} parent=0 // pred_check_branch
    %23 = sbr.rel (0) target = $region13
  $region12: #{cuai_forward.1} parent=0 // pred_region
    _
  $region13: #{cuai_forward.1} parent=0 // pred_fallthru
    _
  // Predicated region
  $region14: #{cuai_forward.1} parent=0 // pred_check
    _
  $region15: #{cuai_forward.1} parent=0 // pred_check_branch
    %25 = sbr.rel (0) target = $region17
  $region16: #{cuai_forward.1} parent=0 // pred_region
    _
  $region17: #{cuai_forward.1} parent=0 // pred_fallthru
    _
  // Predicated region
  $region18: #{cuai_forward.1} parent=0 // pred_check
    _
  $region19: #{cuai_forward.1} parent=0 // pred_check_branch
    %27 = sbr.rel (0) target = $region21
  $region20: #{cuai_forward.1} parent=0 // pred_region
    _
  $region21: #{cuai_forward.1} parent=0 // pred_fallthru
    _
  // Predicated region
  $region22: #{cuai_forward.1} parent=0 // pred_check
    _
  $region23: #{cuai_forward.1} parent=0 // pred_check_branch
    %29 = sbr.rel (0) target = $region25
  $region24: #{cuai_forward.1} parent=0 // pred_region
    _
  $region25: #{cuai_forward.1} parent=0 // pred_fallthru
    _
  // Predicated region
  $region26: #{cuai_forward.1} parent=0 // pred_check
    _
  $region27: #{cuai_forward.1} parent=0 // pred_check_branch
    %31 = sbr.rel (0) target = $region29
  $region28: #{cuai_forward.1} parent=0 // pred_region
    _
  $region29: #{cuai_forward.1} parent=0 // pred_fallthru
    _
  // Predicated region
  $region30: #{cuai_forward.1} parent=0 // pred_check
    _
  $region31: #{cuai_forward.1} parent=0 // pred_check_branch
    %33 = sbr.rel (0) target = $region33
  $region32: #{cuai_forward.1} parent=0 // pred_region
    _
  $region33: #{cuai_forward.1} parent=0 // pred_fallthru
    _
  // Predicated region
  $region34: #{cuai_forward.1} parent=0 // pred_check
    _
  $region35: #{cuai_forward.1} parent=0 // pred_check_branch
    %35 = sbr.rel (0) target = $region37
  $region36: #{cuai_forward.1} parent=0 // pred_region
    _
  $region37: #{cuai_forward.1} parent=0 // pred_fallthru
    _
  // Predicated region
  $region38: #{cuai_forward.1} parent=0 // pred_check
    _
  $region39: #{cuai_forward.1} parent=0 // pred_check_branch
    %37 = sbr.rel (0) target = $region41
  $region40: #{cuai_forward.1} parent=0 // pred_region
    _
  $region41: #{cuai_forward.1} parent=0 // pred_fallthru
    _
  // Predicated region
  $region42: #{cuai_forward.1} parent=0 // pred_check
    _
  $region43: #{cuai_forward.1} parent=0 // pred_check_branch
    %39 = sbr.rel (0) target = $region45
  $region44: #{cuai_forward.1} parent=0 // pred_region
    _
  $region45: #{cuai_forward.1} parent=0 // pred_fallthru
    _
  // Predicated region
  $region46: #{cuai_forward.1} parent=0 // pred_check
    _
  $region47: #{cuai_forward.1} parent=0 // pred_check_branch
    %41 = sbr.rel (0) target = $region49
  $region48: #{cuai_forward.1} parent=0 // pred_region
    _
  $region49: #{cuai_forward.1} parent=0 // pred_fallthru
    _
  // Predicated region
  $region50: #{cuai_forward.1} parent=0 // pred_check
    _
  $region51: #{cuai_forward.1} parent=0 // pred_check_branch
    %43 = sbr.rel (0) target = $region53
  $region52: #{cuai_forward.1} parent=0 // pred_region
    _
  $region53: #{cuai_forward.1} parent=0 // pred_fallthru
    _
  %v45 = vld [vmem:[%s0] sm:$0xff]
  %v46 = vld [vmem:[%s0 + $0x8] sm:$0xff]
  %v47 = vld [vmem:[%s2] sm:$0x1]
  %v48 = vld [vmem:[%s2 + $0x1] sm:$0x1]
  %vm49 = vcmask 523264
  %v50 = vsel %vm49, %v45, 0.0
  %51 = vadd.xlane.f32.xlu0 %v50
  %v52 = vpop.xlane.xlu0 %51
  %v53 = vsel %vm49, %v46, 0.0
  %54 = vadd.xlane.f32.xlu0 %v53
  %v55 = vpop.xlane.xlu0 %54
  %v56 = vrcp.pop 64.0
  %v57 = vmul.f32 %v52, %v56
  %v58 = vmul.f32 %v55, %v56
  %v59 = vsub.f32 %v45, %v57
  %v60 = vsub.f32 %v46, %v58
  %v61 = vmul.f32 %v59, %v59
  %v62 = vmul.f32 %v60, %v60
  %v63 = vsel %vm49, %v61, 0.0
  %64 = vadd.xlane.f32.xlu0 %v63
  %v65 = vpop.xlane.xlu0 %64
  %v66 = vsel %vm49, %v62, 0.0
  %67 = vadd.xlane.f32.xlu0 %v66
  %v68 = vpop.xlane.xlu0 %67
  %v69 = vmul.f32 %v65, %v56
  %v70 = vmul.f32 %v68, %v56
  %v71 = vadd.f32 %v69, 1e-05
  %v72 = vadd.f32 %v70, 1e-05
  %v73 = vrsqrt.pop %v71
  %v74 = vrsqrt.pop %v72
  %v75 = vmul.f32 %v59, %v73
  %v76 = vmul.f32 %v60, %v74
  %v77 = vlaneseq
  %v78 = vshrl.u32 %v77, 7
  %v79 = vsub.s32 0, %v78
  %v80 = vrot.slane %v47, %v79
  %v81 = vmul.f32 %v75, %v80
  %v82 = vmul.f32 %v76, %v80
  %v83 = vlaneseq
  %v84 = vshrl.u32 %v83, 7
  %v85 = vsub.s32 0, %v84
  %v86 = vrot.slane %v48, %v85
  %v87 = vadd.f32 %v81, %v86
  %v88 = vadd.f32 %v82, %v86
  %v89 = vld [vmem:[%s1] sm:$0xff]
  %v90 = vld [vmem:[%s1 + $0x8] sm:$0xff]
  %v91 = vld [vmem:[%s1 + $0x10] sm:$0xff]
  %v92 = vld [vmem:[%s1 + $0x18] sm:$0xff]
  %v93 = vld [vmem:[%s1 + $0x20] sm:$0xff]
  %v94 = vld [vmem:[%s1 + $0x28] sm:$0xff]
  %v95 = vld [vmem:[%s1 + $0x30] sm:$0xff]
  %v96 = vld [vmem:[%s1 + $0x38] sm:$0xff]
  %v97 = vld [vmem:[%s3] sm:$0xff]
  %v98 = vld [vmem:[%s3 + $0x8] sm:$0xff]
  %v99 = vld [vmem:[%s3 + $0x10] sm:$0xff]
  %v100 = vld [vmem:[%s3 + $0x18] sm:$0xff]
  %v101 = vld [vmem:[%s3 + $0x20] sm:$0xff]
  %v102 = vld [vmem:[%s3 + $0x28] sm:$0xff]
  %v103 = vld [vmem:[%s3 + $0x30] sm:$0xff]
  %v104 = vld [vmem:[%s3 + $0x38] sm:$0xff]
  %v105 = vld [vmem:[%s4] sm:$0x3]
  %v106 = vld [vmem:[%s5] sm:$0xf]
  %v107 = vld [vmem:[%s5 + $0x4] sm:$0xf]
  %v108 = vld [vmem:[%s5 + $0x8] sm:$0xf]
  %v109 = vld [vmem:[%s5 + $0xc] sm:$0xf]
  %v110 = vld [vmem:[%s5 + $0x10] sm:$0xf]
  %v111 = vld [vmem:[%s5 + $0x14] sm:$0xf]
  %v112 = vld [vmem:[%s5 + $0x18] sm:$0xf]
  %v113 = vld [vmem:[%s5 + $0x1c] sm:$0xf]
  %v114 = vld [vmem:[%s6] sm:$0xf]
  %v115 = vld [vmem:[%s6 + $0x4] sm:$0xf]
  %v116 = vld [vmem:[%s6 + $0x8] sm:$0xf]
  %v117 = vld [vmem:[%s6 + $0xc] sm:$0xf]
  %v118 = vld [vmem:[%s6 + $0x10] sm:$0xf]
  %v119 = vld [vmem:[%s6 + $0x14] sm:$0xf]
  %v120 = vld [vmem:[%s6 + $0x18] sm:$0xf]
  %v121 = vld [vmem:[%s6 + $0x1c] sm:$0xf]
  %v122 = vld [vmem:[%s7] sm:$0x1]
  %v123 = vld [vmem:[%s8] sm:$0xf]
  %v124 = vld [vmem:[%s8 + $0x4] sm:$0xf]
  %v125 = vld [vmem:[%s8 + $0x8] sm:$0xf]
  %v126 = vld [vmem:[%s8 + $0xc] sm:$0xf]
  %v127 = vld [vmem:[%s8 + $0x10] sm:$0xf]
  %v128 = vld [vmem:[%s8 + $0x14] sm:$0xf]
  %v129 = vld [vmem:[%s8 + $0x18] sm:$0xf]
  %v130 = vld [vmem:[%s8 + $0x1c] sm:$0xf]
  %v131 = vld [vmem:[%s8 + $0x20] sm:$0xf]
  %v132 = vld [vmem:[%s8 + $0x24] sm:$0xf]
  %v133 = vld [vmem:[%s8 + $0x28] sm:$0xf]
  %v134 = vld [vmem:[%s8 + $0x2c] sm:$0xf]
  %v135 = vld [vmem:[%s8 + $0x30] sm:$0xf]
  %v136 = vld [vmem:[%s8 + $0x34] sm:$0xf]
  %v137 = vld [vmem:[%s8 + $0x38] sm:$0xf]
  %v138 = vld [vmem:[%s8 + $0x3c] sm:$0xf]
  %v139 = vld [vmem:[%s9] sm:$0x3f]
  %v140 = vpack.c.bf16 %v88, %v87
  %v142 = vlaneseq
  %v143 = vshrl.u32 %v142, 7
  %v144 = vsub.s32 0, %v143
  %v145 = vrot.slane %v105, %v144
  %v146 = vlaneseq
  %v147 = vshrl.u32 %v146, 7
  %v148 = vsub.s32 1, %v147
  %v149 = vrot.slane %v105, %v148
  %v160 = vunpack.c.l.b16 %v97
  %v161 = vunpack.c.h.b16 %v97
  %v162 = vunpack.c.l.b16 %v98
  %v163 = vunpack.c.h.b16 %v98
  %v164 = vunpack.c.l.b16 %v99
  %v165 = vunpack.c.h.b16 %v99
  %v166 = vunpack.c.l.b16 %v100
  %v167 = vunpack.c.h.b16 %v100
  %v168 = vunpack.c.l.b16 %v101
  %v169 = vunpack.c.h.b16 %v101
  %v170 = vunpack.c.l.b16 %v102
  %v171 = vunpack.c.h.b16 %v102
  %v172 = vunpack.c.l.b16 %v103
  %v173 = vunpack.c.h.b16 %v103
  %v174 = vunpack.c.l.b16 %v104
  %v175 = vunpack.c.h.b16 %v104
  %v176 = vpack.c.b16 %v162, %v160
  %v177 = vpack.c.b16 %v163, %v161
  %v178 = vpack.c.b16 %v166, %v164
  %v179 = vpack.c.b16 %v167, %v165
  %v180 = vpack.c.b16 %v170, %v168
  %v181 = vpack.c.b16 %v171, %v169
  %v182 = vpack.c.b16 %v174, %v172
  %v183 = vpack.c.b16 %v175, %v173
  %v193 = vsel %vm49, %v140, 0
  %195 = vmatprep.subr.bf16.mxu0 %v177
  %196 = vmatpush1.bf16.msra.mxu0 %v176
  %197 = vmatprep.subr.bf16.mxu0 %v179
  %198 = vmatpush1.bf16.msra.mxu0 %v178
  %199 = vmatprep.subr.bf16.mxu0 %v181
  %200 = vmatpush1.bf16.msra.mxu0 %v180
  %201 = vmatprep.subr.bf16.mxu0 %v183
  %202 = vmatpush1.bf16.msra.mxu0 %v182
  %203 = vmatprep.subr.bf16.mxu0 0
  %204 = vmatpush1.bf16.msra.mxu0 0
  %205 = vmatprep.subr.bf16.mxu0 0
  %206 = vmatpush1.bf16.msra.mxu0 0
  %207 = vmatprep.subr.bf16.mxu0 0
  %208 = vmatpush1.bf16.msra.mxu0 0
  %209 = vmatprep.subr.bf16.mxu0 0
  %210 = vmatpush1.bf16.msra.mxu0 0
  %211 = vmatprep.subr.bf16.mxu0 0
  %212 = vmatpush1.bf16.msra.mxu0 0
  %213 = vmatprep.subr.bf16.mxu0 0
  %214 = vmatpush1.bf16.msra.mxu0 0
  %215 = vmatprep.subr.bf16.mxu0 0
  %216 = vmatpush1.bf16.msra.mxu0 0
  %217 = vmatprep.subr.bf16.mxu0 0
  %218 = vmatpush1.bf16.msra.mxu0 0
  %219 = vmatprep.subr.bf16.mxu0 0
  %220 = vmatpush1.bf16.msra.mxu0 0
  %221 = vmatprep.subr.bf16.mxu0 0
  %222 = vmatpush1.bf16.msra.mxu0 0
  %223 = vmatprep.subr.bf16.mxu0 0
  %224 = vmatpush1.bf16.msra.mxu0 0
  %225 = vmatprep.subr.bf16.mxu0 0
  %226 = vmatpush1.bf16.msra.mxu0 0
  %227 = vmatprep.mubr.bf16.mxu0 0
  %228 = vmatmul.mubr.bf16.gmra.mrb[0].mxu0 %v193
  %v229 = vpop.f32.mrb[0].mxu0
  %v230 = vadd.f32 %v145, %v229
  %v231 = vpop.f32.mrb[0].mxu0
  %v232 = vadd.f32 %v149, %v231
  %v233 = vpop.f32.mrb[0].mxu0
  %v234 = vadd.f32 %v145, %v233
  %v235 = vpop.f32.mrb[0].mxu0
  %v236 = vadd.f32 %v149, %v235
  %237 = vdwg.mxu0
  %v238 = vmul.f32 %v230, 0.25
  %v239 = vmul.f32 %v234, 0.25
  %v240 = vpack.c.bf16 %v239, %v238
  %v241 = vpack.c.bf16 %v234, %v230
  %v242 = vpack.c.bf16 %v236, %v232
  %244 = vrot.lane.b32.xlu0 %v241, 64
  %v245 = vpop.permute.xlu0 %244
  %vm246 = vcmask 130048
  %v248 = vsel %vm246, %v240, 0
  %v251 = vsel %vm246, %v245, 0
  %253 = vmatprep.subr.bf16.mxu0 0
  %254 = vmatpush1.bf16.xpose.msra.mxu0 %v251
  %255 = vmatprep.subr.bf16.mxu0 0
  %256 = vmatpush1.bf16.xpose.msra.mxu0 0
  %257 = vmatprep.subr.bf16.mxu0 0
  %258 = vmatpush1.bf16.xpose.msra.mxu0 0
  %259 = vmatprep.subr.bf16.mxu0 0
  %260 = vmatpush1.bf16.xpose.msra.mxu0 0
  %261 = vmatprep.subr.bf16.mxu0 0
  %262 = vmatpush1.bf16.xpose.msra.mxu0 0
  %263 = vmatprep.subr.bf16.mxu0 0
  %264 = vmatpush1.bf16.xpose.msra.mxu0 0
  %265 = vmatprep.subr.bf16.mxu0 0
  %266 = vmatpush1.bf16.xpose.msra.mxu0 0
  %267 = vmatprep.subr.bf16.mxu0 0
  %268 = vmatpush1.bf16.xpose.msra.mxu0 0
  %269 = vmatprep.subr.bf16.mxu0 0
  %270 = vmatpush1.bf16.xpose.msra.mxu0 0
  %271 = vmatprep.subr.bf16.mxu0 0
  %272 = vmatpush1.bf16.xpose.msra.mxu0 0
  %273 = vmatprep.subr.bf16.mxu0 0
  %274 = vmatpush1.bf16.xpose.msra.mxu0 0
  %275 = vmatprep.subr.bf16.mxu0 0
  %276 = vmatpush1.bf16.xpose.msra.mxu0 0
  %277 = vmatprep.subr.bf16.mxu0 0
  %278 = vmatpush1.bf16.xpose.msra.mxu0 0
  %279 = vmatprep.subr.bf16.mxu0 0
  %280 = vmatpush1.bf16.xpose.msra.mxu0 0
  %281 = vmatprep.subr.bf16.mxu0 0
  %282 = vmatpush1.bf16.xpose.msra.mxu0 0
  %283 = vmatprep.subr.bf16.mxu0 0
  %284 = vmatpush1.bf16.xpose.msra.mxu0 0
  %285 = vmatprep.mubr.bf16.mxu0 0
  %286 = vmatmul.mubr.bf16.gmra.mrb[0].mxu0 %v248
  %v287 = vpop.f32.mrb[0].mxu0
  %v288 = vadd.f32 0.0, %v287
  %v289 = vpop.f32.mrb[0].mxu0
  %v290 = vpop.f32.mrb[0].mxu0
  %v291 = vadd.f32 0.0, %v290
  %v292 = vpop.f32.mrb[0].mxu0
  %293 = vdwg.mxu0
  %295 = vrot.lane.b32.xlu0 %v240, 112
  %v296 = vpop.permute.xlu0 %295
  %297 = vrot.lane.b32.xlu0 %v241, 48
  %v298 = vpop.permute.xlu0 %297
  %v300 = vsel %vm246, %v296, 0
  %v303 = vsel %vm246, %v298, 0
  %305 = vmatprep.subr.bf16.mxu0 0
  %306 = vmatpush1.bf16.xpose.msra.mxu0 %v303
  %307 = vmatprep.subr.bf16.mxu0 0
  %308 = vmatpush1.bf16.xpose.msra.mxu0 0
  %309 = vmatprep.subr.bf16.mxu0 0
  %310 = vmatpush1.bf16.xpose.msra.mxu0 0
  %311 = vmatprep.subr.bf16.mxu0 0
  %312 = vmatpush1.bf16.xpose.msra.mxu0 0
  %313 = vmatprep.subr.bf16.mxu0 0
  %314 = vmatpush1.bf16.xpose.msra.mxu0 0
  %315 = vmatprep.subr.bf16.mxu0 0
  %316 = vmatpush1.bf16.xpose.msra.mxu0 0
  %317 = vmatprep.subr.bf16.mxu0 0
  %318 = vmatpush1.bf16.xpose.msra.mxu0 0
  %319 = vmatprep.subr.bf16.mxu0 0
  %320 = vmatpush1.bf16.xpose.msra.mxu0 0
  %321 = vmatprep.subr.bf16.mxu0 0
  %322 = vmatpush1.bf16.xpose.msra.mxu0 0
  %323 = vmatprep.subr.bf16.mxu0 0
  %324 = vmatpush1.bf16.xpose.msra.mxu0 0
  %325 = vmatprep.subr.bf16.mxu0 0
  %326 = vmatpush1.bf16.xpose.msra.mxu0 0
  %327 = vmatprep.subr.bf16.mxu0 0
  %328 = vmatpush1.bf16.xpose.msra.mxu0 0
  %329 = vmatprep.subr.bf16.mxu0 0
  %330 = vmatpush1.bf16.xpose.msra.mxu0 0
  %331 = vmatprep.subr.bf16.mxu0 0
  %332 = vmatpush1.bf16.xpose.msra.mxu0 0
  %333 = vmatprep.subr.bf16.mxu0 0
  %334 = vmatpush1.bf16.xpose.msra.mxu0 0
  %335 = vmatprep.subr.bf16.mxu0 0
  %336 = vmatpush1.bf16.xpose.msra.mxu0 0
  %337 = vmatprep.mubr.bf16.mxu0 0
  %338 = vmatmul.mubr.bf16.gmra.mrb[0].mxu0 %v300
  %v339 = vpop.f32.mrb[0].mxu0
  %v340 = vadd.f32 0.0, %v339
  %v341 = vpop.f32.mrb[0].mxu0
  %v342 = vpop.f32.mrb[0].mxu0
  %v343 = vadd.f32 0.0, %v342
  %v344 = vpop.f32.mrb[0].mxu0
  %345 = vdwg.mxu0
  %346 = vrot.lane.b32.xlu0 %v240, 96
  %v347 = vpop.permute.xlu0 %346
  %348 = vrot.lane.b32.xlu0 %v241, 32
  %v349 = vpop.permute.xlu0 %348
  %v351 = vsel %vm246, %v347, 0
  %v354 = vsel %vm246, %v349, 0
  %356 = vmatprep.subr.bf16.mxu0 0
  %357 = vmatpush1.bf16.xpose.msra.mxu0 %v354
  %358 = vmatprep.subr.bf16.mxu0 0
  %359 = vmatpush1.bf16.xpose.msra.mxu0 0
  %360 = vmatprep.subr.bf16.mxu0 0
  %361 = vmatpush1.bf16.xpose.msra.mxu0 0
  %362 = vmatprep.subr.bf16.mxu0 0
  %363 = vmatpush1.bf16.xpose.msra.mxu0 0
  %364 = vmatprep.subr.bf16.mxu0 0
  %365 = vmatpush1.bf16.xpose.msra.mxu0 0
  %366 = vmatprep.subr.bf16.mxu0 0
  %367 = vmatpush1.bf16.xpose.msra.mxu0 0
  %368 = vmatprep.subr.bf16.mxu0 0
  %369 = vmatpush1.bf16.xpose.msra.mxu0 0
  %370 = vmatprep.subr.bf16.mxu0 0
  %371 = vmatpush1.bf16.xpose.msra.mxu0 0
  %372 = vmatprep.subr.bf16.mxu0 0
  %373 = vmatpush1.bf16.xpose.msra.mxu0 0
  %374 = vmatprep.subr.bf16.mxu0 0
  %375 = vmatpush1.bf16.xpose.msra.mxu0 0
  %376 = vmatprep.subr.bf16.mxu0 0
  %377 = vmatpush1.bf16.xpose.msra.mxu0 0
  %378 = vmatprep.subr.bf16.mxu0 0
  %379 = vmatpush1.bf16.xpose.msra.mxu0 0
  %380 = vmatprep.subr.bf16.mxu0 0
  %381 = vmatpush1.bf16.xpose.msra.mxu0 0
  %382 = vmatprep.subr.bf16.mxu0 0
  %383 = vmatpush1.bf16.xpose.msra.mxu0 0
  %384 = vmatprep.subr.bf16.mxu0 0
  %385 = vmatpush1.bf16.xpose.msra.mxu0 0
  %386 = vmatprep.subr.bf16.mxu0 0
  %387 = vmatpush1.bf16.xpose.msra.mxu0 0
  %388 = vmatprep.mubr.bf16.mxu0 0
  %389 = vmatmul.mubr.bf16.gmra.mrb[0].mxu0 %v351
  %v390 = vpop.f32.mrb[0].mxu0
  %v391 = vadd.f32 0.0, %v390
  %v392 = vpop.f32.mrb[0].mxu0
  %v393 = vpop.f32.mrb[0].mxu0
  %v394 = vadd.f32 0.0, %v393
  %v395 = vpop.f32.mrb[0].mxu0
  %396 = vdwg.mxu0
  %397 = vrot.lane.b32.xlu0 %v240, 80
  %v398 = vpop.permute.xlu0 %397
  %399 = vrot.lane.b32.xlu0 %v241, 16
  %v400 = vpop.permute.xlu0 %399
  %v402 = vsel %vm246, %v398, 0
  %v405 = vsel %vm246, %v400, 0
  %407 = vmatprep.subr.bf16.mxu0 0
  %408 = vmatpush1.bf16.xpose.msra.mxu0 %v405
  %409 = vmatprep.subr.bf16.mxu0 0
  %410 = vmatpush1.bf16.xpose.msra.mxu0 0
  %411 = vmatprep.subr.bf16.mxu0 0
  %412 = vmatpush1.bf16.xpose.msra.mxu0 0
  %413 = vmatprep.subr.bf16.mxu0 0
  %414 = vmatpush1.bf16.xpose.msra.mxu0 0
  %415 = vmatprep.subr.bf16.mxu0 0
  %416 = vmatpush1.bf16.xpose.msra.mxu0 0
  %417 = vmatprep.subr.bf16.mxu0 0
  %418 = vmatpush1.bf16.xpose.msra.mxu0 0
  %419 = vmatprep.subr.bf16.mxu0 0
  %420 = vmatpush1.bf16.xpose.msra.mxu0 0
  %421 = vmatprep.subr.bf16.mxu0 0
  %422 = vmatpush1.bf16.xpose.msra.mxu0 0
  %423 = vmatprep.subr.bf16.mxu0 0
  %424 = vmatpush1.bf16.xpose.msra.mxu0 0
  %425 = vmatprep.subr.bf16.mxu0 0
  %426 = vmatpush1.bf16.xpose.msra.mxu0 0
  %427 = vmatprep.subr.bf16.mxu0 0
  %428 = vmatpush1.bf16.xpose.msra.mxu0 0
  %429 = vmatprep.subr.bf16.mxu0 0
  %430 = vmatpush1.bf16.xpose.msra.mxu0 0
  %431 = vmatprep.subr.bf16.mxu0 0
  %432 = vmatpush1.bf16.xpose.msra.mxu0 0
  %433 = vmatprep.subr.bf16.mxu0 0
  %434 = vmatpush1.bf16.xpose.msra.mxu0 0
  %435 = vmatprep.subr.bf16.mxu0 0
  %436 = vmatpush1.bf16.xpose.msra.mxu0 0
  %437 = vmatprep.subr.bf16.mxu0 0
  %438 = vmatpush1.bf16.xpose.msra.mxu0 0
  %439 = vmatprep.mubr.bf16.mxu0 0
  %440 = vmatmul.mubr.bf16.gmra.mrb[0].mxu0 %v402
  %v441 = vpop.f32.mrb[0].mxu0
  %v442 = vadd.f32 0.0, %v441
  %v443 = vpop.f32.mrb[0].mxu0
  %v444 = vpop.f32.mrb[0].mxu0
  %v445 = vadd.f32 0.0, %v444
  %v446 = vpop.f32.mrb[0].mxu0
  %447 = vdwg.mxu0
  %v448 = vadd.f32 %v288, %v89
  %v449 = vadd.f32 %v291, %v90
  %v450 = vadd.f32 %v340, %v91
  %v451 = vadd.f32 %v343, %v92
  %v452 = vadd.f32 %v391, %v93
  %v453 = vadd.f32 %v394, %v94
  %v454 = vadd.f32 %v442, %v95
  %v455 = vadd.f32 %v445, %v96
  %v456 = vsel %vm246, %v448, -inf
  %457 = vmax.xlane.f32.xlu0 %v456
  %v458 = vpop.xlane.xlu0 %457
  %v459 = vsel %vm246, %v449, -inf
  %460 = vmax.xlane.f32.xlu0 %v459
  %v461 = vpop.xlane.xlu0 %460
  %v462 = vsel %vm246, %v450, -inf
  %463 = vmax.xlane.f32.xlu0 %v462
  %v464 = vpop.xlane.xlu0 %463
  %v465 = vsel %vm246, %v451, -inf
  %466 = vmax.xlane.f32.xlu0 %v465
  %v467 = vpop.xlane.xlu0 %466
  %v468 = vsel %vm246, %v452, -inf
  %469 = vmax.xlane.f32.xlu0 %v468
  %v470 = vpop.xlane.xlu0 %469
  %v471 = vsel %vm246, %v453, -inf
  %472 = vmax.xlane.f32.xlu0 %v471
  %v473 = vpop.xlane.xlu0 %472
  %v474 = vsel %vm246, %v454, -inf
  %475 = vmax.xlane.f32.xlu0 %v474
  %v476 = vpop.xlane.xlu0 %475
  %v477 = vsel %vm246, %v455, -inf
  %478 = vmax.xlane.f32.xlu0 %v477
  %v479 = vpop.xlane.xlu0 %478
  %v480 = vsub.f32 %v448, %v458
  %v481 = vsub.f32 %v449, %v461
  %v482 = vsub.f32 %v450, %v464
  %v483 = vsub.f32 %v451, %v467
  %v484 = vsub.f32 %v452, %v470
  %v485 = vsub.f32 %v453, %v473
  %v486 = vsub.f32 %v454, %v476
  %v487 = vsub.f32 %v455, %v479
  %v488 = vmul.f32 %v480, 1.442695
  %v489 = vpow.pop %v488
  %v490 = vmul.f32 %v481, 1.442695
  %v491 = vpow.pop %v490
  %v492 = vmul.f32 %v482, 1.442695
  %v493 = vpow.pop %v492
  %v494 = vmul.f32 %v483, 1.442695
  %v495 = vpow.pop %v494
  %v496 = vmul.f32 %v484, 1.442695
  %v497 = vpow.pop %v496
  %v498 = vmul.f32 %v485, 1.442695
  %v499 = vpow.pop %v498
  %v500 = vmul.f32 %v486, 1.442695
  %v501 = vpow.pop %v500
  %v502 = vmul.f32 %v487, 1.442695
  %v503 = vpow.pop %v502
  %v504 = vsel %vm246, %v489, 0.0
  %505 = vadd.xlane.f32.xlu0 %v504
  %v506 = vpop.xlane.xlu0 %505
  %v507 = vsel %vm246, %v491, 0.0
  %508 = vadd.xlane.f32.xlu0 %v507
  %v509 = vpop.xlane.xlu0 %508
  %v510 = vsel %vm246, %v493, 0.0
  %511 = vadd.xlane.f32.xlu0 %v510
  %v512 = vpop.xlane.xlu0 %511
  %v513 = vsel %vm246, %v495, 0.0
  %514 = vadd.xlane.f32.xlu0 %v513
  %v515 = vpop.xlane.xlu0 %514
  %v516 = vsel %vm246, %v497, 0.0
  %517 = vadd.xlane.f32.xlu0 %v516
  %v518 = vpop.xlane.xlu0 %517
  %v519 = vsel %vm246, %v499, 0.0
  %520 = vadd.xlane.f32.xlu0 %v519
  %v521 = vpop.xlane.xlu0 %520
  %v522 = vsel %vm246, %v501, 0.0
  %523 = vadd.xlane.f32.xlu0 %v522
  %v524 = vpop.xlane.xlu0 %523
  %v525 = vsel %vm246, %v503, 0.0
  %526 = vadd.xlane.f32.xlu0 %v525
  %v527 = vpop.xlane.xlu0 %526
  %v528 = vrcp.pop %v506
  %v529 = vrcp.pop %v509
  %v530 = vrcp.pop %v512
  %v531 = vrcp.pop %v515
  %v532 = vrcp.pop %v518
  %v533 = vrcp.pop %v521
  %v534 = vrcp.pop %v524
  %v535 = vrcp.pop %v527
  %v536 = vmul.f32 %v489, %v528
  %v537 = vmul.f32 %v491, %v529
  %v538 = vmul.f32 %v493, %v530
  %v539 = vmul.f32 %v495, %v531
  %v540 = vmul.f32 %v497, %v532
  %v541 = vmul.f32 %v499, %v533
  %v542 = vmul.f32 %v501, %v534
  %v543 = vmul.f32 %v503, %v535
  %v544 = vpack.c.bf16 %v537, %v536
  %v545 = vpack.c.bf16 %v539, %v538
  %v546 = vpack.c.bf16 %v541, %v540
  %v547 = vpack.c.bf16 %v543, %v542
  %v549 = vsel %vm246, %v544, 0
  %551 = vmatprep.subr.bf16.mxu0 0
  %552 = vmatpush1.bf16.msra.mxu0 %v242
  %553 = vmatprep.subr.bf16.mxu0 0
  %554 = vmatpush1.bf16.msra.mxu0 0
  %555 = vmatprep.subr.bf16.mxu0 0
  %556 = vmatpush1.bf16.msra.mxu0 0
  %557 = vmatprep.subr.bf16.mxu0 0
  %558 = vmatpush1.bf16.msra.mxu0 0
  %559 = vmatprep.subr.bf16.mxu0 0
  %560 = vmatpush1.bf16.msra.mxu0 0
  %561 = vmatprep.subr.bf16.mxu0 0
  %562 = vmatpush1.bf16.msra.mxu0 0
  %563 = vmatprep.subr.bf16.mxu0 0
  %564 = vmatpush1.bf16.msra.mxu0 0
  %565 = vmatprep.subr.bf16.mxu0 0
  %566 = vmatpush1.bf16.msra.mxu0 0
  %567 = vmatprep.subr.bf16.mxu0 0
  %568 = vmatpush1.bf16.msra.mxu0 0
  %569 = vmatprep.subr.bf16.mxu0 0
  %570 = vmatpush1.bf16.msra.mxu0 0
  %571 = vmatprep.subr.bf16.mxu0 0
  %572 = vmatpush1.bf16.msra.mxu0 0
  %573 = vmatprep.subr.bf16.mxu0 0
  %574 = vmatpush1.bf16.msra.mxu0 0
  %575 = vmatprep.subr.bf16.mxu0 0
  %576 = vmatpush1.bf16.msra.mxu0 0
  %577 = vmatprep.subr.bf16.mxu0 0
  %578 = vmatpush1.bf16.msra.mxu0 0
  %579 = vmatprep.subr.bf16.mxu0 0
  %580 = vmatpush1.bf16.msra.mxu0 0
  %581 = vmatprep.subr.bf16.mxu0 0
  %582 = vmatpush1.bf16.msra.mxu0 0
  %583 = vmatprep.mubr.bf16.mxu0 0
  %584 = vmatmul.mubr.bf16.gmra.mrb[0].mxu0 %v549
  %v585 = vpop.f32.mrb[0].mxu0
  %v586 = vadd.f32 0.0, %v585
  %v587 = vpop.f32.mrb[0].mxu0
  %v588 = vpop.f32.mrb[0].mxu0
  %v589 = vadd.f32 0.0, %v588
  %v590 = vpop.f32.mrb[0].mxu0
  %591 = vdwg.mxu0
  %593 = vrot.lane.b32.xlu0 %v242, 112
  %v594 = vpop.permute.xlu0 %593
  %v597 = vsel %vm246, %v545, 0
  %599 = vmatprep.subr.bf16.mxu0 0
  %600 = vmatpush1.bf16.msra.mxu0 %v594
  %601 = vmatprep.subr.bf16.mxu0 0
  %602 = vmatpush1.bf16.msra.mxu0 0
  %603 = vmatprep.subr.bf16.mxu0 0
  %604 = vmatpush1.bf16.msra.mxu0 0
  %605 = vmatprep.subr.bf16.mxu0 0
  %606 = vmatpush1.bf16.msra.mxu0 0
  %607 = vmatprep.subr.bf16.mxu0 0
  %608 = vmatpush1.bf16.msra.mxu0 0
  %609 = vmatprep.subr.bf16.mxu0 0
  %610 = vmatpush1.bf16.msra.mxu0 0
  %611 = vmatprep.subr.bf16.mxu0 0
  %612 = vmatpush1.bf16.msra.mxu0 0
  %613 = vmatprep.subr.bf16.mxu0 0
  %614 = vmatpush1.bf16.msra.mxu0 0
  %615 = vmatprep.subr.bf16.mxu0 0
  %616 = vmatpush1.bf16.msra.mxu0 0
  %617 = vmatprep.subr.bf16.mxu0 0
  %618 = vmatpush1.bf16.msra.mxu0 0
  %619 = vmatprep.subr.bf16.mxu0 0
  %620 = vmatpush1.bf16.msra.mxu0 0
  %621 = vmatprep.subr.bf16.mxu0 0
  %622 = vmatpush1.bf16.msra.mxu0 0
  %623 = vmatprep.subr.bf16.mxu0 0
  %624 = vmatpush1.bf16.msra.mxu0 0
  %625 = vmatprep.subr.bf16.mxu0 0
  %626 = vmatpush1.bf16.msra.mxu0 0
  %627 = vmatprep.subr.bf16.mxu0 0
  %628 = vmatpush1.bf16.msra.mxu0 0
  %629 = vmatprep.subr.bf16.mxu0 0
  %630 = vmatpush1.bf16.msra.mxu0 0
  %631 = vmatprep.mubr.bf16.mxu0 0
  %632 = vmatmul.mubr.bf16.gmra.mrb[0].mxu0 %v597
  %v633 = vpop.f32.mrb[0].mxu0
  %v634 = vadd.f32 0.0, %v633
  %v635 = vpop.f32.mrb[0].mxu0
  %v636 = vpop.f32.mrb[0].mxu0
  %v637 = vadd.f32 0.0, %v636
  %v638 = vpop.f32.mrb[0].mxu0
  %639 = vdwg.mxu0
  %640 = vrot.lane.b32.xlu0 %v242, 96
  %v641 = vpop.permute.xlu0 %640
  %v644 = vsel %vm246, %v546, 0
  %646 = vmatprep.subr.bf16.mxu0 0
  %647 = vmatpush1.bf16.msra.mxu0 %v641
  %648 = vmatprep.subr.bf16.mxu0 0
  %649 = vmatpush1.bf16.msra.mxu0 0
  %650 = vmatprep.subr.bf16.mxu0 0
  %651 = vmatpush1.bf16.msra.mxu0 0
  %652 = vmatprep.subr.bf16.mxu0 0
  %653 = vmatpush1.bf16.msra.mxu0 0
  %654 = vmatprep.subr.bf16.mxu0 0
  %655 = vmatpush1.bf16.msra.mxu0 0
  %656 = vmatprep.subr.bf16.mxu0 0
  %657 = vmatpush1.bf16.msra.mxu0 0
  %658 = vmatprep.subr.bf16.mxu0 0
  %659 = vmatpush1.bf16.msra.mxu0 0
  %660 = vmatprep.subr.bf16.mxu0 0
  %661 = vmatpush1.bf16.msra.mxu0 0
  %662 = vmatprep.subr.bf16.mxu0 0
  %663 = vmatpush1.bf16.msra.mxu0 0
  %664 = vmatprep.subr.bf16.mxu0 0
  %665 = vmatpush1.bf16.msra.mxu0 0
  %666 = vmatprep.subr.bf16.mxu0 0
  %667 = vmatpush1.bf16.msra.mxu0 0
  %668 = vmatprep.subr.bf16.mxu0 0
  %669 = vmatpush1.bf16.msra.mxu0 0
  %670 = vmatprep.subr.bf16.mxu0 0
  %671 = vmatpush1.bf16.msra.mxu0 0
  %672 = vmatprep.subr.bf16.mxu0 0
  %673 = vmatpush1.bf16.msra.mxu0 0
  %674 = vmatprep.subr.bf16.mxu0 0
  %675 = vmatpush1.bf16.msra.mxu0 0
  %676 = vmatprep.subr.bf16.mxu0 0
  %677 = vmatpush1.bf16.msra.mxu0 0
  %678 = vmatprep.mubr.bf16.mxu0 0
  %679 = vmatmul.mubr.bf16.gmra.mrb[0].mxu0 %v644
  %v680 = vpop.f32.mrb[0].mxu0
  %v681 = vadd.f32 0.0, %v680
  %v682 = vpop.f32.mrb[0].mxu0
  %v683 = vpop.f32.mrb[0].mxu0
  %v684 = vadd.f32 0.0, %v683
  %v685 = vpop.f32.mrb[0].mxu0
  %686 = vdwg.mxu0
  %687 = vrot.lane.b32.xlu0 %v242, 80
  %v688 = vpop.permute.xlu0 %687
  %v691 = vsel %vm246, %v547, 0
  %693 = vmatprep.subr.bf16.mxu0 0
  %694 = vmatpush1.bf16.msra.mxu0 %v688
  %695 = vmatprep.subr.bf16.mxu0 0
  %696 = vmatpush1.bf16.msra.mxu0 0
  %697 = vmatprep.subr.bf16.mxu0 0
  %698 = vmatpush1.bf16.msra.mxu0 0
  %699 = vmatprep.subr.bf16.mxu0 0
  %700 = vmatpush1.bf16.msra.mxu0 0
  %701 = vmatprep.subr.bf16.mxu0 0
  %702 = vmatpush1.bf16.msra.mxu0 0
  %703 = vmatprep.subr.bf16.mxu0 0
  %704 = vmatpush1.bf16.msra.mxu0 0
  %705 = vmatprep.subr.bf16.mxu0 0
  %706 = vmatpush1.bf16.msra.mxu0 0
  %707 = vmatprep.subr.bf16.mxu0 0
  %708 = vmatpush1.bf16.msra.mxu0 0
  %709 = vmatprep.subr.bf16.mxu0 0
  %710 = vmatpush1.bf16.msra.mxu0 0
  %711 = vmatprep.subr.bf16.mxu0 0
  %712 = vmatpush1.bf16.msra.mxu0 0
  %713 = vmatprep.subr.bf16.mxu0 0
  %714 = vmatpush1.bf16.msra.mxu0 0
  %715 = vmatprep.subr.bf16.mxu0 0
  %716 = vmatpush1.bf16.msra.mxu0 0
  %717 = vmatprep.subr.bf16.mxu0 0
  %718 = vmatpush1.bf16.msra.mxu0 0
  %719 = vmatprep.subr.bf16.mxu0 0
  %720 = vmatpush1.bf16.msra.mxu0 0
  %721 = vmatprep.subr.bf16.mxu0 0
  %722 = vmatpush1.bf16.msra.mxu0 0
  %723 = vmatprep.subr.bf16.mxu0 0
  %724 = vmatpush1.bf16.msra.mxu0 0
  %725 = vmatprep.mubr.bf16.mxu0 0
  %726 = vmatmul.mubr.bf16.gmra.mrb[0].mxu0 %v691
  %v727 = vpop.f32.mrb[0].mxu0
  %v728 = vadd.f32 0.0, %v727
  %v729 = vpop.f32.mrb[0].mxu0
  %v730 = vpop.f32.mrb[0].mxu0
  %v731 = vadd.f32 0.0, %v730
  %v732 = vpop.f32.mrb[0].mxu0
  %733 = vdwg.mxu0
  %736 = vrot.lane.b32.xlu0 %v634, 16
  %v737 = vpop.permute.xlu0 %736
  %738 = vrot.lane.b32.xlu0 %v637, 16
  %v739 = vpop.permute.xlu0 %738
  %744 = vrot.lane.b32.xlu0 %v681, 32
  %v745 = vpop.permute.xlu0 %744
  %746 = vrot.lane.b32.xlu0 %v684, 32
  %v747 = vpop.permute.xlu0 %746
  %752 = vrot.lane.b32.xlu0 %v728, 48
  %v753 = vpop.permute.xlu0 %752
  %754 = vrot.lane.b32.xlu0 %v731, 48
  %v755 = vpop.permute.xlu0 %754
  %v758 = vsel %vm246, %v586, %v737
  %v759 = vsel %vm246, %v589, %v739
  %vm760 = vcmask 261120
  %v761 = vsel %vm760, %v758, %v745
  %v762 = vsel %vm760, %v759, %v747
  %vm763 = vcmask 392192
  %v764 = vsel %vm763, %v761, %v753
  %v765 = vsel %vm763, %v762, %v755
  %v766 = vpack.c.bf16 %v765, %v764
  %v767 = vlaneseq
  %v768 = vshrl.u32 %v767, 7
  %v769 = vsub.s32 0, %v768
  %v770 = vrot.slane %v139, %v769
  %v779 = vunpack.c.l.b16 %v106
  %v780 = vunpack.c.l.b16 %v107
  %v781 = vunpack.c.l.b16 %v108
  %v782 = vunpack.c.l.b16 %v109
  %v783 = vunpack.c.l.b16 %v110
  %v784 = vunpack.c.l.b16 %v111
  %v785 = vunpack.c.l.b16 %v112
  %v786 = vunpack.c.l.b16 %v113
  %v787 = vpack.c.b16 %v780, %v779
  %v788 = vpack.c.b16 %v782, %v781
  %v789 = vpack.c.b16 %v784, %v783
  %v790 = vpack.c.b16 %v786, %v785
  %v796 = vsel %vm49, %v766, 0
  %798 = vmatprep.subr.bf16.mxu0 0
  %799 = vmatpush1.bf16.msra.mxu0 %v787
  %800 = vmatprep.subr.bf16.mxu0 0
  %801 = vmatpush1.bf16.msra.mxu0 %v788
  %802 = vmatprep.subr.bf16.mxu0 0
  %803 = vmatpush1.bf16.msra.mxu0 %v789
  %804 = vmatprep.subr.bf16.mxu0 0
  %805 = vmatpush1.bf16.msra.mxu0 %v790
  %806 = vmatprep.subr.bf16.mxu0 0
  %807 = vmatpush1.bf16.msra.mxu0 0
  %808 = vmatprep.subr.bf16.mxu0 0
  %809 = vmatpush1.bf16.msra.mxu0 0
  %810 = vmatprep.subr.bf16.mxu0 0
  %811 = vmatpush1.bf16.msra.mxu0 0
  %812 = vmatprep.subr.bf16.mxu0 0
  %813 = vmatpush1.bf16.msra.mxu0 0
  %814 = vmatprep.subr.bf16.mxu0 0
  %815 = vmatpush1.bf16.msra.mxu0 0
  %816 = vmatprep.subr.bf16.mxu0 0
  %817 = vmatpush1.bf16.msra.mxu0 0
  %818 = vmatprep.subr.bf16.mxu0 0
  %819 = vmatpush1.bf16.msra.mxu0 0
  %820 = vmatprep.subr.bf16.mxu0 0
  %821 = vmatpush1.bf16.msra.mxu0 0
  %822 = vmatprep.subr.bf16.mxu0 0
  %823 = vmatpush1.bf16.msra.mxu0 0
  %824 = vmatprep.subr.bf16.mxu0 0
  %825 = vmatpush1.bf16.msra.mxu0 0
  %826 = vmatprep.subr.bf16.mxu0 0
  %827 = vmatpush1.bf16.msra.mxu0 0
  %828 = vmatprep.subr.bf16.mxu0 0
  %829 = vmatpush1.bf16.msra.mxu0 0
  %830 = vmatprep.mubr.bf16.mxu0 0
  %831 = vmatmul.mubr.bf16.gmra.mrb[0].mxu0 %v796
  %v832 = vpop.f32.mrb[0].mxu0
  %v833 = vadd.f32 %v770, %v832
  %v834 = vpop.f32.mrb[0].mxu0
  %v835 = vpop.f32.mrb[0].mxu0
  %v836 = vadd.f32 %v770, %v835
  %v837 = vpop.f32.mrb[0].mxu0
  %838 = vdwg.mxu0
  %v839 = vadd.f32 %v87, %v833
  %v840 = vadd.f32 %v88, %v836
  %v841 = vsel %vm49, %v839, 0.0
  %842 = vadd.xlane.f32.xlu0 %v841
  %v843 = vpop.xlane.xlu0 %842
  %v844 = vsel %vm49, %v840, 0.0
  %845 = vadd.xlane.f32.xlu0 %v844
  %v846 = vpop.xlane.xlu0 %845
  %v847 = vmul.f32 %v843, %v56
  %v848 = vmul.f32 %v846, %v56
  %v849 = vsub.f32 %v839, %v847
  %v850 = vsub.f32 %v840, %v848
  %v851 = vmul.f32 %v849, %v849
  %v852 = vmul.f32 %v850, %v850
  %v853 = vsel %vm49, %v851, 0.0
  %854 = vadd.xlane.f32.xlu0 %v853
  %v855 = vpop.xlane.xlu0 %854
  %v856 = vsel %vm49, %v852, 0.0
  %857 = vadd.xlane.f32.xlu0 %v856
  %v858 = vpop.xlane.xlu0 %857
  %v859 = vmul.f32 %v855, %v56
  %v860 = vmul.f32 %v858, %v56
  %v861 = vadd.f32 %v859, 1e-05
  %v862 = vadd.f32 %v860, 1e-05
  %v863 = vrsqrt.pop %v861
  %v864 = vrsqrt.pop %v862
  %v865 = vmul.f32 %v849, %v863
  %v866 = vmul.f32 %v850, %v864
  %v867 = vlaneseq
  %v868 = vshrl.u32 %v867, 7
  %v869 = vsub.s32 1, %v868
  %v870 = vrot.slane %v139, %v869
  %v871 = vmul.f32 %v865, %v870
  %v872 = vmul.f32 %v866, %v870
  %v873 = vlaneseq
  %v874 = vshrl.u32 %v873, 7
  %v875 = vsub.s32 2, %v874
  %v876 = vrot.slane %v139, %v875
  %v877 = vadd.f32 %v871, %v876
  %v878 = vadd.f32 %v872, %v876
  %v879 = vpack.c.bf16 %v878, %v877
  %v881 = vlaneseq
  %v882 = vshrl.u32 %v881, 7
  %v883 = vsub.s32 0, %v882
  %v884 = vrot.slane %v122, %v883
  %v894 = vunpack.c.l.b16 %v114
  %v895 = vunpack.c.l.b16 %v115
  %v896 = vunpack.c.l.b16 %v116
  %v897 = vunpack.c.l.b16 %v117
  %v898 = vunpack.c.l.b16 %v118
  %v899 = vunpack.c.l.b16 %v119
  %v900 = vunpack.c.l.b16 %v120
  %v901 = vunpack.c.l.b16 %v121
  %v902 = vpack.c.b16 %v895, %v894
  %v903 = vpack.c.b16 %v897, %v896
  %v904 = vpack.c.b16 %v899, %v898
  %v905 = vpack.c.b16 %v901, %v900
  %v911 = vsel %vm49, %v879, 0
  %913 = vmatprep.subr.bf16.mxu0 0
  %914 = vmatpush1.bf16.msra.mxu0 %v902
  %915 = vmatprep.subr.bf16.mxu0 0
  %916 = vmatpush1.bf16.msra.mxu0 %v903
  %917 = vmatprep.subr.bf16.mxu0 0
  %918 = vmatpush1.bf16.msra.mxu0 %v904
  %919 = vmatprep.subr.bf16.mxu0 0
  %920 = vmatpush1.bf16.msra.mxu0 %v905
  %921 = vmatprep.subr.bf16.mxu0 0
  %922 = vmatpush1.bf16.msra.mxu0 0
  %923 = vmatprep.subr.bf16.mxu0 0
  %924 = vmatpush1.bf16.msra.mxu0 0
  %925 = vmatprep.subr.bf16.mxu0 0
  %926 = vmatpush1.bf16.msra.mxu0 0
  %927 = vmatprep.subr.bf16.mxu0 0
  %928 = vmatpush1.bf16.msra.mxu0 0
  %929 = vmatprep.subr.bf16.mxu0 0
  %930 = vmatpush1.bf16.msra.mxu0 0
  %931 = vmatprep.subr.bf16.mxu0 0
  %932 = vmatpush1.bf16.msra.mxu0 0
  %933 = vmatprep.subr.bf16.mxu0 0
  %934 = vmatpush1.bf16.msra.mxu0 0
  %935 = vmatprep.subr.bf16.mxu0 0
  %936 = vmatpush1.bf16.msra.mxu0 0
  %937 = vmatprep.subr.bf16.mxu0 0
  %938 = vmatpush1.bf16.msra.mxu0 0
  %939 = vmatprep.subr.bf16.mxu0 0
  %940 = vmatpush1.bf16.msra.mxu0 0
  %941 = vmatprep.subr.bf16.mxu0 0
  %942 = vmatpush1.bf16.msra.mxu0 0
  %943 = vmatprep.subr.bf16.mxu0 0
  %944 = vmatpush1.bf16.msra.mxu0 0
  %945 = vmatprep.mubr.bf16.mxu0 0
  %946 = vmatmul.mubr.bf16.gmra.mrb[0].mxu0 %v911
  %v947 = vpop.f32.mrb[0].mxu0
  %v948 = vadd.f32 %v884, %v947
  %v949 = vpop.f32.mrb[0].mxu0
  %v950 = vpop.f32.mrb[0].mxu0
  %v951 = vadd.f32 %v884, %v950
  %v952 = vpop.f32.mrb[0].mxu0
  %953 = vdwg.mxu0
  %v954 = vmul.f32 %v948, %v948
  %v955 = vmul.f32 %v951, %v951
  %v956 = vmul.f32 %v948, %v954
  %v957 = vmul.f32 %v951, %v955
  %v958 = vmul.f32 %v956, 0.044715
  %v959 = vmul.f32 %v957, 0.044715
  %v960 = vadd.f32 %v948, %v958
  %v961 = vadd.f32 %v951, %v959
  %v962 = vmul.f32 %v960, 0.7978846
  %v963 = vmul.f32 %v961, 0.7978846
  %v964 = vtanh.pop %v962
  %v965 = vtanh.pop %v963
  %v966 = vadd.f32 %v964, 1.0
  %v967 = vadd.f32 %v965, 1.0
  %v968 = vmul.f32 %v966, 0.5
  %v969 = vmul.f32 %v967, 0.5
  %v970 = vmul.f32 %v948, %v968
  %v971 = vmul.f32 %v951, %v969
  %v972 = vpack.c.bf16 %v971, %v970
  %v973 = vlaneseq
  %v974 = vshrl.u32 %v973, 7
  %v975 = vsub.s32 3, %v974
  %v976 = vrot.slane %v139, %v975
  %v993 = vunpack.c.l.b16 %v123
  %v994 = vunpack.c.l.b16 %v124
  %v995 = vunpack.c.l.b16 %v125
  %v996 = vunpack.c.l.b16 %v126
  %v997 = vunpack.c.l.b16 %v127
  %v998 = vunpack.c.l.b16 %v128
  %v999 = vunpack.c.l.b16 %v129
  %v1000 = vunpack.c.l.b16 %v130
  %v1001 = vunpack.c.l.b16 %v131
  %v1002 = vunpack.c.l.b16 %v132
  %v1003 = vunpack.c.l.b16 %v133
  %v1004 = vunpack.c.l.b16 %v134
  %v1005 = vunpack.c.l.b16 %v135
  %v1006 = vunpack.c.l.b16 %v136
  %v1007 = vunpack.c.l.b16 %v137
  %v1008 = vunpack.c.l.b16 %v138
  %v1009 = vpack.c.b16 %v994, %v993
  %v1010 = vpack.c.b16 %v996, %v995
  %v1011 = vpack.c.b16 %v998, %v997
  %v1012 = vpack.c.b16 %v1000, %v999
  %v1013 = vpack.c.b16 %v1002, %v1001
  %v1014 = vpack.c.b16 %v1004, %v1003
  %v1015 = vpack.c.b16 %v1006, %v1005
  %v1016 = vpack.c.b16 %v1008, %v1007
  %1025 = vmatprep.subr.bf16.mxu0 0
  %1026 = vmatpush1.bf16.msra.mxu0 %v1009
  %1027 = vmatprep.subr.bf16.mxu0 0
  %1028 = vmatpush1.bf16.msra.mxu0 %v1010
  %1029 = vmatprep.subr.bf16.mxu0 0
  %1030 = vmatpush1.bf16.msra.mxu0 %v1011
  %1031 = vmatprep.subr.bf16.mxu0 0
  %1032 = vmatpush1.bf16.msra.mxu0 %v1012
  %1033 = vmatprep.subr.bf16.mxu0 0
  %1034 = vmatpush1.bf16.msra.mxu0 %v1013
  %1035 = vmatprep.subr.bf16.mxu0 0
  %1036 = vmatpush1.bf16.msra.mxu0 %v1014
  %1037 = vmatprep.subr.bf16.mxu0 0
  %1038 = vmatpush1.bf16.msra.mxu0 %v1015
  %1039 = vmatprep.subr.bf16.mxu0 0
  %1040 = vmatpush1.bf16.msra.mxu0 %v1016
  %1041 = vmatprep.subr.bf16.mxu0 0
  %1042 = vmatpush1.bf16.msra.mxu0 0
  %1043 = vmatprep.subr.bf16.mxu0 0
  %1044 = vmatpush1.bf16.msra.mxu0 0
  %1045 = vmatprep.subr.bf16.mxu0 0
  %1046 = vmatpush1.bf16.msra.mxu0 0
  %1047 = vmatprep.subr.bf16.mxu0 0
  %1048 = vmatpush1.bf16.msra.mxu0 0
  %1049 = vmatprep.subr.bf16.mxu0 0
  %1050 = vmatpush1.bf16.msra.mxu0 0
  %1051 = vmatprep.subr.bf16.mxu0 0
  %1052 = vmatpush1.bf16.msra.mxu0 0
  %1053 = vmatprep.subr.bf16.mxu0 0
  %1054 = vmatpush1.bf16.msra.mxu0 0
  %1055 = vmatprep.subr.bf16.mxu0 0
  %1056 = vmatpush1.bf16.msra.mxu0 0
  %1057 = vmatprep.mubr.bf16.mxu0 0
  %1058 = vmatmul.mubr.bf16.gmra.mrb[0].mxu0 %v972
  %v1059 = vpop.f32.mrb[0].mxu0
  %v1060 = vadd.f32 %v976, %v1059
  %v1061 = vpop.f32.mrb[0].mxu0
  %v1062 = vpop.f32.mrb[0].mxu0
  %v1063 = vadd.f32 %v976, %v1062
  %v1064 = vpop.f32.mrb[0].mxu0
  %1065 = vdwg.mxu0
  %v1066 = vadd.f32 %v877, %v1060
  %v1067 = vadd.f32 %v878, %v1063
  %v1068 = vsel %vm49, %v1066, 0.0
  %1069 = vadd.xlane.f32.xlu0 %v1068
  %v1070 = vpop.xlane.xlu0 %1069
  %v1071 = vsel %vm49, %v1067, 0.0
  %1072 = vadd.xlane.f32.xlu0 %v1071
  %v1073 = vpop.xlane.xlu0 %1072
  %v1074 = vmul.f32 %v1070, %v56
  %v1075 = vmul.f32 %v1073, %v56
  %v1076 = vsub.f32 %v1066, %v1074
  %v1077 = vsub.f32 %v1067, %v1075
  %v1078 = vmul.f32 %v1076, %v1076
  %v1079 = vmul.f32 %v1077, %v1077
  %v1080 = vsel %vm49, %v1078, 0.0
  %1081 = vadd.xlane.f32.xlu0 %v1080
  %v1082 = vpop.xlane.xlu0 %1081
  %v1083 = vsel %vm49, %v1079, 0.0
  %1084 = vadd.xlane.f32.xlu0 %v1083
  %v1085 = vpop.xlane.xlu0 %1084
  %v1086 = vmul.f32 %v1082, %v56
  %v1087 = vmul.f32 %v1085, %v56
  %v1088 = vadd.f32 %v1086, 1e-05
  %v1089 = vadd.f32 %v1087, 1e-05
  %v1090 = vrsqrt.pop %v1088
  %v1091 = vrsqrt.pop %v1089
  %v1092 = vmul.f32 %v1076, %v1090
  %v1093 = vmul.f32 %v1077, %v1091
  %v1094 = vlaneseq
  %v1095 = vshrl.u32 %v1094, 7
  %v1096 = vsub.s32 4, %v1095
  %v1097 = vrot.slane %v139, %v1096
  %v1098 = vmul.f32 %v1092, %v1097
  %v1099 = vmul.f32 %v1093, %v1097
  %v1100 = vlaneseq
  %v1101 = vshrl.u32 %v1100, 7
  %v1102 = vsub.s32 5, %v1101
  %v1103 = vrot.slane %v139, %v1102
  %v1104 = vadd.f32 %v1098, %v1103
  %v1105 = vadd.f32 %v1099, %v1103
  %s1106 = scalar_lea.vmem %s3, 64
  %v1107 = vld [vmem:[%s1106] sm:$0xff]
  %v1108 = vld [vmem:[%s1106 + $0x8] sm:$0xff]
  %v1109 = vld [vmem:[%s1106 + $0x10] sm:$0xff]
  %v1110 = vld [vmem:[%s1106 + $0x18] sm:$0xff]
  %v1111 = vld [vmem:[%s1106 + $0x20] sm:$0xff]
  %v1112 = vld [vmem:[%s1106 + $0x28] sm:$0xff]
  %v1113 = vld [vmem:[%s1106 + $0x30] sm:$0xff]
  %v1114 = vld [vmem:[%s1106 + $0x38] sm:$0xff]
  %s1115 = scalar_lea.vmem %s4, 2
  %v1116 = vld [vmem:[%s1115] sm:$0x3]
  %s1117 = scalar_lea.vmem %s5, 32
  %v1118 = vld [vmem:[%s1117] sm:$0xf]
  %v1119 = vld [vmem:[%s1117 + $0x4] sm:$0xf]
  %v1120 = vld [vmem:[%s1117 + $0x8] sm:$0xf]
  %v1121 = vld [vmem:[%s1117 + $0xc] sm:$0xf]
  %v1122 = vld [vmem:[%s1117 + $0x10] sm:$0xf]
  %v1123 = vld [vmem:[%s1117 + $0x14] sm:$0xf]
  %v1124 = vld [vmem:[%s1117 + $0x18] sm:$0xf]
  %v1125 = vld [vmem:[%s1117 + $0x1c] sm:$0xf]
  %s1126 = scalar_lea.vmem %s6, 32
  %v1127 = vld [vmem:[%s1126] sm:$0xf]
  %v1128 = vld [vmem:[%s1126 + $0x4] sm:$0xf]
  %v1129 = vld [vmem:[%s1126 + $0x8] sm:$0xf]
  %v1130 = vld [vmem:[%s1126 + $0xc] sm:$0xf]
  %v1131 = vld [vmem:[%s1126 + $0x10] sm:$0xf]
  %v1132 = vld [vmem:[%s1126 + $0x14] sm:$0xf]
  %v1133 = vld [vmem:[%s1126 + $0x18] sm:$0xf]
  %v1134 = vld [vmem:[%s1126 + $0x1c] sm:$0xf]
  %s1135 = scalar_lea.vmem %s7, 1
  %v1136 = vld [vmem:[%s1135] sm:$0x1]
  %s1137 = scalar_lea.vmem %s8, 64
  %v1138 = vld [vmem:[%s1137] sm:$0xf]
  %v1139 = vld [vmem:[%s1137 + $0x4] sm:$0xf]
  %v1140 = vld [vmem:[%s1137 + $0x8] sm:$0xf]
  %v1141 = vld [vmem:[%s1137 + $0xc] sm:$0xf]
  %v1142 = vld [vmem:[%s1137 + $0x10] sm:$0xf]
  %v1143 = vld [vmem:[%s1137 + $0x14] sm:$0xf]
  %v1144 = vld [vmem:[%s1137 + $0x18] sm:$0xf]
  %v1145 = vld [vmem:[%s1137 + $0x1c] sm:$0xf]
  %v1146 = vld [vmem:[%s1137 + $0x20] sm:$0xf]
  %v1147 = vld [vmem:[%s1137 + $0x24] sm:$0xf]
  %v1148 = vld [vmem:[%s1137 + $0x28] sm:$0xf]
  %v1149 = vld [vmem:[%s1137 + $0x2c] sm:$0xf]
  %v1150 = vld [vmem:[%s1137 + $0x30] sm:$0xf]
  %v1151 = vld [vmem:[%s1137 + $0x34] sm:$0xf]
  %v1152 = vld [vmem:[%s1137 + $0x38] sm:$0xf]
  %v1153 = vld [vmem:[%s1137 + $0x3c] sm:$0xf]
  %s1154 = scalar_lea.vmem %s9, 8
  %v1155 = vld [vmem:[%s1154] sm:$0x3f]
  %v1156 = vpack.c.bf16 %v1105, %v1104
  %v1158 = vlaneseq
  %v1159 = vshrl.u32 %v1158, 7
  %v1160 = vsub.s32 0, %v1159
  %v1161 = vrot.slane %v1116, %v1160
  %v1162 = vlaneseq
  %v1163 = vshrl.u32 %v1162, 7
  %v1164 = vsub.s32 1, %v1163
  %v1165 = vrot.slane %v1116, %v1164
  %v1176 = vunpack.c.l.b16 %v1107
  %v1177 = vunpack.c.h.b16 %v1107
  %v1178 = vunpack.c.l.b16 %v1108
  %v1179 = vunpack.c.h.b16 %v1108
  %v1180 = vunpack.c.l.b16 %v1109
  %v1181 = vunpack.c.h.b16 %v1109
  %v1182 = vunpack.c.l.b16 %v1110
  %v1183 = vunpack.c.h.b16 %v1110
  %v1184 = vunpack.c.l.b16 %v1111
  %v1185 = vunpack.c.h.b16 %v1111
  %v1186 = vunpack.c.l.b16 %v1112
  %v1187 = vunpack.c.h.b16 %v1112
  %v1188 = vunpack.c.l.b16 %v1113
  %v1189 = vunpack.c.h.b16 %v1113
  %v1190 = vunpack.c.l.b16 %v1114
  %v1191 = vunpack.c.h.b16 %v1114
  %v1192 = vpack.c.b16 %v1178, %v1176
  %v1193 = vpack.c.b16 %v1179, %v1177
  %v1194 = vpack.c.b16 %v1182, %v1180
  %v1195 = vpack.c.b16 %v1183, %v1181
  %v1196 = vpack.c.b16 %v1186, %v1184
  %v1197 = vpack.c.b16 %v1187, %v1185
  %v1198 = vpack.c.b16 %v1190, %v1188
  %v1199 = vpack.c.b16 %v1191, %v1189
  %v1209 = vsel %vm49, %v1156, 0
  %1211 = vmatprep.subr.bf16.mxu0 %v1193
  %1212 = vmatpush1.bf16.msra.mxu0 %v1192
  %1213 = vmatprep.subr.bf16.mxu0 %v1195
  %1214 = vmatpush1.bf16.msra.mxu0 %v1194
  %1215 = vmatprep.subr.bf16.mxu0 %v1197
  %1216 = vmatpush1.bf16.msra.mxu0 %v1196
  %1217 = vmatprep.subr.bf16.mxu0 %v1199
  %1218 = vmatpush1.bf16.msra.mxu0 %v1198
  %1219 = vmatprep.subr.bf16.mxu0 0
  %1220 = vmatpush1.bf16.msra.mxu0 0
  %1221 = vmatprep.subr.bf16.mxu0 0
  %1222 = vmatpush1.bf16.msra.mxu0 0
  %1223 = vmatprep.subr.bf16.mxu0 0
  %1224 = vmatpush1.bf16.msra.mxu0 0
  %1225 = vmatprep.subr.bf16.mxu0 0
  %1226 = vmatpush1.bf16.msra.mxu0 0
  %1227 = vmatprep.subr.bf16.mxu0 0
  %1228 = vmatpush1.bf16.msra.mxu0 0
  %1229 = vmatprep.subr.bf16.mxu0 0
  %1230 = vmatpush1.bf16.msra.mxu0 0
  %1231 = vmatprep.subr.bf16.mxu0 0
  %1232 = vmatpush1.bf16.msra.mxu0 0
  %1233 = vmatprep.subr.bf16.mxu0 0
  %1234 = vmatpush1.bf16.msra.mxu0 0
  %1235 = vmatprep.subr.bf16.mxu0 0
  %1236 = vmatpush1.bf16.msra.mxu0 0
  %1237 = vmatprep.subr.bf16.mxu0 0
  %1238 = vmatpush1.bf16.msra.mxu0 0
  %1239 = vmatprep.subr.bf16.mxu0 0
  %1240 = vmatpush1.bf16.msra.mxu0 0
  %1241 = vmatprep.subr.bf16.mxu0 0
  %1242 = vmatpush1.bf16.msra.mxu0 0
  %1243 = vmatprep.mubr.bf16.mxu0 0
  %1244 = vmatmul.mubr.bf16.gmra.mrb[0].mxu0 %v1209
  %v1245 = vpop.f32.mrb[0].mxu0
  %v1246 = vadd.f32 %v1161, %v1245
  %v1247 = vpop.f32.mrb[0].mxu0
  %v1248 = vadd.f32 %v1165, %v1247
  %v1249 = vpop.f32.mrb[0].mxu0
  %v1250 = vadd.f32 %v1161, %v1249
  %v1251 = vpop.f32.mrb[0].mxu0
  %v1252 = vadd.f32 %v1165, %v1251
  %1253 = vdwg.mxu0
  %v1254 = vmul.f32 %v1246, 0.25
  %v1255 = vmul.f32 %v1250, 0.25
  %v1256 = vpack.c.bf16 %v1255, %v1254
  %v1257 = vpack.c.bf16 %v1250, %v1246
  %v1258 = vpack.c.bf16 %v1252, %v1248
  %1260 = vrot.lane.b32.xlu0 %v1257, 64
  %v1261 = vpop.permute.xlu0 %1260
  %v1263 = vsel %vm246, %v1256, 0
  %v1266 = vsel %vm246, %v1261, 0
  %1268 = vmatprep.subr.bf16.mxu0 0
  %1269 = vmatpush1.bf16.xpose.msra.mxu0 %v1266
  %1270 = vmatprep.subr.bf16.mxu0 0
  %1271 = vmatpush1.bf16.xpose.msra.mxu0 0
  %1272 = vmatprep.subr.bf16.mxu0 0
  %1273 = vmatpush1.bf16.xpose.msra.mxu0 0
  %1274 = vmatprep.subr.bf16.mxu0 0
  %1275 = vmatpush1.bf16.xpose.msra.mxu0 0
  %1276 = vmatprep.subr.bf16.mxu0 0
  %1277 = vmatpush1.bf16.xpose.msra.mxu0 0
  %1278 = vmatprep.subr.bf16.mxu0 0
  %1279 = vmatpush1.bf16.xpose.msra.mxu0 0
  %1280 = vmatprep.subr.bf16.mxu0 0
  %1281 = vmatpush1.bf16.xpose.msra.mxu0 0
  %1282 = vmatprep.subr.bf16.mxu0 0
  %1283 = vmatpush1.bf16.xpose.msra.mxu0 0
  %1284 = vmatprep.subr.bf16.mxu0 0
  %1285 = vmatpush1.bf16.xpose.msra.mxu0 0
  %1286 = vmatprep.subr.bf16.mxu0 0
  %1287 = vmatpush1.bf16.xpose.msra.mxu0 0
  %1288 = vmatprep.subr.bf16.mxu0 0
  %1289 = vmatpush1.bf16.xpose.msra.mxu0 0
  %1290 = vmatprep.subr.bf16.mxu0 0
  %1291 = vmatpush1.bf16.xpose.msra.mxu0 0
  %1292 = vmatprep.subr.bf16.mxu0 0
  %1293 = vmatpush1.bf16.xpose.msra.mxu0 0
  %1294 = vmatprep.subr.bf16.mxu0 0
  %1295 = vmatpush1.bf16.xpose.msra.mxu0 0
  %1296 = vmatprep.subr.bf16.mxu0 0
  %1297 = vmatpush1.bf16.xpose.msra.mxu0 0
  %1298 = vmatprep.subr.bf16.mxu0 0
  %1299 = vmatpush1.bf16.xpose.msra.mxu0 0
  %1300 = vmatprep.mubr.bf16.mxu0 0
  %1301 = vmatmul.mubr.bf16.gmra.mrb[0].mxu0 %v1263
  %v1302 = vpop.f32.mrb[0].mxu0
  %v1303 = vadd.f32 0.0, %v1302
  %v1304 = vpop.f32.mrb[0].mxu0
  %v1305 = vpop.f32.mrb[0].mxu0
  %v1306 = vadd.f32 0.0, %v1305
  %v1307 = vpop.f32.mrb[0].mxu0
  %1308 = vdwg.mxu0
  %1310 = vrot.lane.b32.xlu0 %v1256, 112
  %v1311 = vpop.permute.xlu0 %1310
  %1312 = vrot.lane.b32.xlu0 %v1257, 48
  %v1313 = vpop.permute.xlu0 %1312
  %v1315 = vsel %vm246, %v1311, 0
  %v1318 = vsel %vm246, %v1313, 0
  %1320 = vmatprep.subr.bf16.mxu0 0
  %1321 = vmatpush1.bf16.xpose.msra.mxu0 %v1318
  %1322 = vmatprep.subr.bf16.mxu0 0
  %1323 = vmatpush1.bf16.xpose.msra.mxu0 0
  %1324 = vmatprep.subr.bf16.mxu0 0
  %1325 = vmatpush1.bf16.xpose.msra.mxu0 0
  %1326 = vmatprep.subr.bf16.mxu0 0
  %1327 = vmatpush1.bf16.xpose.msra.mxu0 0
  %1328 = vmatprep.subr.bf16.mxu0 0
  %1329 = vmatpush1.bf16.xpose.msra.mxu0 0
  %1330 = vmatprep.subr.bf16.mxu0 0
  %1331 = vmatpush1.bf16.xpose.msra.mxu0 0
  %1332 = vmatprep.subr.bf16.mxu0 0
  %1333 = vmatpush1.bf16.xpose.msra.mxu0 0
  %1334 = vmatprep.subr.bf16.mxu0 0
  %1335 = vmatpush1.bf16.xpose.msra.mxu0 0
  %1336 = vmatprep.subr.bf16.mxu0 0
  %1337 = vmatpush1.bf16.xpose.msra.mxu0 0
  %1338 = vmatprep.subr.bf16.mxu0 0
  %1339 = vmatpush1.bf16.xpose.msra.mxu0 0
  %1340 = vmatprep.subr.bf16.mxu0 0
  %1341 = vmatpush1.bf16.xpose.msra.mxu0 0
  %1342 = vmatprep.subr.bf16.mxu0 0
  %1343 = vmatpush1.bf16.xpose.msra.mxu0 0
  %1344 = vmatprep.subr.bf16.mxu0 0
  %1345 = vmatpush1.bf16.xpose.msra.mxu0 0
  %1346 = vmatprep.subr.bf16.mxu0 0
  %1347 = vmatpush1.bf16.xpose.msra.mxu0 0
  %1348 = vmatprep.subr.bf16.mxu0 0
  %1349 = vmatpush1.bf16.xpose.msra.mxu0 0
  %1350 = vmatprep.subr.bf16.mxu0 0
  %1351 = vmatpush1.bf16.xpose.msra.mxu0 0
  %1352 = vmatprep.mubr.bf16.mxu0 0
  %1353 = vmatmul.mubr.bf16.gmra.mrb[0].mxu0 %v1315
  %v1354 = vpop.f32.mrb[0].mxu0
  %v1355 = vadd.f32 0.0, %v1354
  %v1356 = vpop.f32.mrb[0].mxu0
  %v1357 = vpop.f32.mrb[0].mxu0
  %v1358 = vadd.f32 0.0, %v1357
  %v1359 = vpop.f32.mrb[0].mxu0
  %1360 = vdwg.mxu0
  %1361 = vrot.lane.b32.xlu0 %v1256, 96
  %v1362 = vpop.permute.xlu0 %1361
  %1363 = vrot.lane.b32.xlu0 %v1257, 32
  %v1364 = vpop.permute.xlu0 %1363
  %v1366 = vsel %vm246, %v1362, 0
  %v1369 = vsel %vm246, %v1364, 0
  %1371 = vmatprep.subr.bf16.mxu0 0
  %1372 = vmatpush1.bf16.xpose.msra.mxu0 %v1369
  %1373 = vmatprep.subr.bf16.mxu0 0
  %1374 = vmatpush1.bf16.xpose.msra.mxu0 0
  %1375 = vmatprep.subr.bf16.mxu0 0
  %1376 = vmatpush1.bf16.xpose.msra.mxu0 0
  %1377 = vmatprep.subr.bf16.mxu0 0
  %1378 = vmatpush1.bf16.xpose.msra.mxu0 0
  %1379 = vmatprep.subr.bf16.mxu0 0
  %1380 = vmatpush1.bf16.xpose.msra.mxu0 0
  %1381 = vmatprep.subr.bf16.mxu0 0
  %1382 = vmatpush1.bf16.xpose.msra.mxu0 0
  %1383 = vmatprep.subr.bf16.mxu0 0
  %1384 = vmatpush1.bf16.xpose.msra.mxu0 0
  %1385 = vmatprep.subr.bf16.mxu0 0
  %1386 = vmatpush1.bf16.xpose.msra.mxu0 0
  %1387 = vmatprep.subr.bf16.mxu0 0
  %1388 = vmatpush1.bf16.xpose.msra.mxu0 0
  %1389 = vmatprep.subr.bf16.mxu0 0
  %1390 = vmatpush1.bf16.xpose.msra.mxu0 0
  %1391 = vmatprep.subr.bf16.mxu0 0
  %1392 = vmatpush1.bf16.xpose.msra.mxu0 0
  %1393 = vmatprep.subr.bf16.mxu0 0
  %1394 = vmatpush1.bf16.xpose.msra.mxu0 0
  %1395 = vmatprep.subr.bf16.mxu0 0
  %1396 = vmatpush1.bf16.xpose.msra.mxu0 0
  %1397 = vmatprep.subr.bf16.mxu0 0
  %1398 = vmatpush1.bf16.xpose.msra.mxu0 0
  %1399 = vmatprep.subr.bf16.mxu0 0
  %1400 = vmatpush1.bf16.xpose.msra.mxu0 0
  %1401 = vmatprep.subr.bf16.mxu0 0
  %1402 = vmatpush1.bf16.xpose.msra.mxu0 0
  %1403 = vmatprep.mubr.bf16.mxu0 0
  %1404 = vmatmul.mubr.bf16.gmra.mrb[0].mxu0 %v1366
  %v1405 = vpop.f32.mrb[0].mxu0
  %v1406 = vadd.f32 0.0, %v1405
  %v1407 = vpop.f32.mrb[0].mxu0
  %v1408 = vpop.f32.mrb[0].mxu0
  %v1409 = vadd.f32 0.0, %v1408
  %v1410 = vpop.f32.mrb[0].mxu0
  %1411 = vdwg.mxu0
  %1412 = vrot.lane.b32.xlu0 %v1256, 80
  %v1413 = vpop.permute.xlu0 %1412
  %1414 = vrot.lane.b32.xlu0 %v1257, 16
  %v1415 = vpop.permute.xlu0 %1414
  %v1417 = vsel %vm246, %v1413, 0
  %v1420 = vsel %vm246, %v1415, 0
  %1422 = vmatprep.subr.bf16.mxu0 0
  %1423 = vmatpush1.bf16.xpose.msra.mxu0 %v1420
  %1424 = vmatprep.subr.bf16.mxu0 0
  %1425 = vmatpush1.bf16.xpose.msra.mxu0 0
  %1426 = vmatprep.subr.bf16.mxu0 0
  %1427 = vmatpush1.bf16.xpose.msra.mxu0 0
  %1428 = vmatprep.subr.bf16.mxu0 0
  %1429 = vmatpush1.bf16.xpose.msra.mxu0 0
  %1430 = vmatprep.subr.bf16.mxu0 0
  %1431 = vmatpush1.bf16.xpose.msra.mxu0 0
  %1432 = vmatprep.subr.bf16.mxu0 0
  %1433 = vmatpush1.bf16.xpose.msra.mxu0 0
  %1434 = vmatprep.subr.bf16.mxu0 0
  %1435 = vmatpush1.bf16.xpose.msra.mxu0 0
  %1436 = vmatprep.subr.bf16.mxu0 0
  %1437 = vmatpush1.bf16.xpose.msra.mxu0 0
  %1438 = vmatprep.subr.bf16.mxu0 0
  %1439 = vmatpush1.bf16.xpose.msra.mxu0 0
  %1440 = vmatprep.subr.bf16.mxu0 0
  %1441 = vmatpush1.bf16.xpose.msra.mxu0 0
  %1442 = vmatprep.subr.bf16.mxu0 0
  %1443 = vmatpush1.bf16.xpose.msra.mxu0 0
  %1444 = vmatprep.subr.bf16.mxu0 0
  %1445 = vmatpush1.bf16.xpose.msra.mxu0 0
  %1446 = vmatprep.subr.bf16.mxu0 0
  %1447 = vmatpush1.bf16.xpose.msra.mxu0 0
  %1448 = vmatprep.subr.bf16.mxu0 0
  %1449 = vmatpush1.bf16.xpose.msra.mxu0 0
  %1450 = vmatprep.subr.bf16.mxu0 0
  %1451 = vmatpush1.bf16.xpose.msra.mxu0 0
  %1452 = vmatprep.subr.bf16.mxu0 0
  %1453 = vmatpush1.bf16.xpose.msra.mxu0 0
  %1454 = vmatprep.mubr.bf16.mxu0 0
  %1455 = vmatmul.mubr.bf16.gmra.mrb[0].mxu0 %v1417
  %v1456 = vpop.f32.mrb[0].mxu0
  %v1457 = vadd.f32 0.0, %v1456
  %v1458 = vpop.f32.mrb[0].mxu0
  %v1459 = vpop.f32.mrb[0].mxu0
  %v1460 = vadd.f32 0.0, %v1459
  %v1461 = vpop.f32.mrb[0].mxu0
  %1462 = vdwg.mxu0
  %v1463 = vadd.f32 %v1303, %v89
  %v1464 = vadd.f32 %v1306, %v90
  %v1465 = vadd.f32 %v1355, %v91
  %v1466 = vadd.f32 %v1358, %v92
  %v1467 = vadd.f32 %v1406, %v93
  %v1468 = vadd.f32 %v1409, %v94
  %v1469 = vadd.f32 %v1457, %v95
  %v1470 = vadd.f32 %v1460, %v96
  %v1471 = vsel %vm246, %v1463, -inf
  %1472 = vmax.xlane.f32.xlu0 %v1471
  %v1473 = vpop.xlane.xlu0 %1472
  %v1474 = vsel %vm246, %v1464, -inf
  %1475 = vmax.xlane.f32.xlu0 %v1474
  %v1476 = vpop.xlane.xlu0 %1475
  %v1477 = vsel %vm246, %v1465, -inf
  %1478 = vmax.xlane.f32.xlu0 %v1477
  %v1479 = vpop.xlane.xlu0 %1478
  %v1480 = vsel %vm246, %v1466, -inf
  %1481 = vmax.xlane.f32.xlu0 %v1480
  %v1482 = vpop.xlane.xlu0 %1481
  %v1483 = vsel %vm246, %v1467, -inf
  %1484 = vmax.xlane.f32.xlu0 %v1483
  %v1485 = vpop.xlane.xlu0 %1484
  %v1486 = vsel %vm246, %v1468, -inf
  %1487 = vmax.xlane.f32.xlu0 %v1486
  %v1488 = vpop.xlane.xlu0 %1487
  %v1489 = vsel %vm246, %v1469, -inf
  %1490 = vmax.xlane.f32.xlu0 %v1489
  %v1491 = vpop.xlane.xlu0 %1490
  %v1492 = vsel %vm246, %v1470, -inf
  %1493 = vmax.xlane.f32.xlu0 %v1492
  %v1494 = vpop.xlane.xlu0 %1493
  %v1495 = vsub.f32 %v1463, %v1473
  %v1496 = vsub.f32 %v1464, %v1476
  %v1497 = vsub.f32 %v1465, %v1479
  %v1498 = vsub.f32 %v1466, %v1482
  %v1499 = vsub.f32 %v1467, %v1485
  %v1500 = vsub.f32 %v1468, %v1488
  %v1501 = vsub.f32 %v1469, %v1491
  %v1502 = vsub.f32 %v1470, %v1494
  %v1503 = vmul.f32 %v1495, 1.442695
  %v1504 = vpow.pop %v1503
  %v1505 = vmul.f32 %v1496, 1.442695
  %v1506 = vpow.pop %v1505
  %v1507 = vmul.f32 %v1497, 1.442695
  %v1508 = vpow.pop %v1507
  %v1509 = vmul.f32 %v1498, 1.442695
  %v1510 = vpow.pop %v1509
  %v1511 = vmul.f32 %v1499, 1.442695
  %v1512 = vpow.pop %v1511
  %v1513 = vmul.f32 %v1500, 1.442695
  %v1514 = vpow.pop %v1513
  %v1515 = vmul.f32 %v1501, 1.442695
  %v1516 = vpow.pop %v1515
  %v1517 = vmul.f32 %v1502, 1.442695
  %v1518 = vpow.pop %v1517
  %v1519 = vsel %vm246, %v1504, 0.0
  %1520 = vadd.xlane.f32.xlu0 %v1519
  %v1521 = vpop.xlane.xlu0 %1520
  %v1522 = vsel %vm246, %v1506, 0.0
  %1523 = vadd.xlane.f32.xlu0 %v1522
  %v1524 = vpop.xlane.xlu0 %1523
  %v1525 = vsel %vm246, %v1508, 0.0
  %1526 = vadd.xlane.f32.xlu0 %v1525
  %v1527 = vpop.xlane.xlu0 %1526
  %v1528 = vsel %vm246, %v1510, 0.0
  %1529 = vadd.xlane.f32.xlu0 %v1528
  %v1530 = vpop.xlane.xlu0 %1529
  %v1531 = vsel %vm246, %v1512, 0.0
  %1532 = vadd.xlane.f32.xlu0 %v1531
  %v1533 = vpop.xlane.xlu0 %1532
  %v1534 = vsel %vm246, %v1514, 0.0
  %1535 = vadd.xlane.f32.xlu0 %v1534
  %v1536 = vpop.xlane.xlu0 %1535
  %v1537 = vsel %vm246, %v1516, 0.0
  %1538 = vadd.xlane.f32.xlu0 %v1537
  %v1539 = vpop.xlane.xlu0 %1538
  %v1540 = vsel %vm246, %v1518, 0.0
  %1541 = vadd.xlane.f32.xlu0 %v1540
  %v1542 = vpop.xlane.xlu0 %1541
  %v1543 = vrcp.pop %v1521
  %v1544 = vrcp.pop %v1524
  %v1545 = vrcp.pop %v1527
  %v1546 = vrcp.pop %v1530
  %v1547 = vrcp.pop %v1533
  %v1548 = vrcp.pop %v1536
  %v1549 = vrcp.pop %v1539
  %v1550 = vrcp.pop %v1542
  %v1551 = vmul.f32 %v1504, %v1543
  %v1552 = vmul.f32 %v1506, %v1544
  %v1553 = vmul.f32 %v1508, %v1545
  %v1554 = vmul.f32 %v1510, %v1546
  %v1555 = vmul.f32 %v1512, %v1547
  %v1556 = vmul.f32 %v1514, %v1548
  %v1557 = vmul.f32 %v1516, %v1549
  %v1558 = vmul.f32 %v1518, %v1550
  %v1559 = vpack.c.bf16 %v1552, %v1551
  %v1560 = vpack.c.bf16 %v1554, %v1553
  %v1561 = vpack.c.bf16 %v1556, %v1555
  %v1562 = vpack.c.bf16 %v1558, %v1557
  %v1564 = vsel %vm246, %v1559, 0
  %1566 = vmatprep.subr.bf16.mxu0 0
  %1567 = vmatpush1.bf16.msra.mxu0 %v1258
  %1568 = vmatprep.subr.bf16.mxu0 0
  %1569 = vmatpush1.bf16.msra.mxu0 0
  %1570 = vmatprep.subr.bf16.mxu0 0
  %1571 = vmatpush1.bf16.msra.mxu0 0
  %1572 = vmatprep.subr.bf16.mxu0 0
  %1573 = vmatpush1.bf16.msra.mxu0 0
  %1574 = vmatprep.subr.bf16.mxu0 0
  %1575 = vmatpush1.bf16.msra.mxu0 0
  %1576 = vmatprep.subr.bf16.mxu0 0
  %1577 = vmatpush1.bf16.msra.mxu0 0
  %1578 = vmatprep.subr.bf16.mxu0 0
  %1579 = vmatpush1.bf16.msra.mxu0 0
  %1580 = vmatprep.subr.bf16.mxu0 0
  %1581 = vmatpush1.bf16.msra.mxu0 0
  %1582 = vmatprep.subr.bf16.mxu0 0
  %1583 = vmatpush1.bf16.msra.mxu0 0
  %1584 = vmatprep.subr.bf16.mxu0 0
  %1585 = vmatpush1.bf16.msra.mxu0 0
  %1586 = vmatprep.subr.bf16.mxu0 0
  %1587 = vmatpush1.bf16.msra.mxu0 0
  %1588 = vmatprep.subr.bf16.mxu0 0
  %1589 = vmatpush1.bf16.msra.mxu0 0
  %1590 = vmatprep.subr.bf16.mxu0 0
  %1591 = vmatpush1.bf16.msra.mxu0 0
  %1592 = vmatprep.subr.bf16.mxu0 0
  %1593 = vmatpush1.bf16.msra.mxu0 0
  %1594 = vmatprep.subr.bf16.mxu0 0
  %1595 = vmatpush1.bf16.msra.mxu0 0
  %1596 = vmatprep.subr.bf16.mxu0 0
  %1597 = vmatpush1.bf16.msra.mxu0 0
  %1598 = vmatprep.mubr.bf16.mxu0 0
  %1599 = vmatmul.mubr.bf16.gmra.mrb[0].mxu0 %v1564
  %v1600 = vpop.f32.mrb[0].mxu0
  %v1601 = vadd.f32 0.0, %v1600
  %v1602 = vpop.f32.mrb[0].mxu0
  %v1603 = vpop.f32.mrb[0].mxu0
  %v1604 = vadd.f32 0.0, %v1603
  %v1605 = vpop.f32.mrb[0].mxu0
  %1606 = vdwg.mxu0
  %1608 = vrot.lane.b32.xlu0 %v1258, 112
  %v1609 = vpop.permute.xlu0 %1608
  %v1612 = vsel %vm246, %v1560, 0
  %1614 = vmatprep.subr.bf16.mxu0 0
  %1615 = vmatpush1.bf16.msra.mxu0 %v1609
  %1616 = vmatprep.subr.bf16.mxu0 0
  %1617 = vmatpush1.bf16.msra.mxu0 0
  %1618 = vmatprep.subr.bf16.mxu0 0
  %1619 = vmatpush1.bf16.msra.mxu0 0
  %1620 = vmatprep.subr.bf16.mxu0 0
  %1621 = vmatpush1.bf16.msra.mxu0 0
  %1622 = vmatprep.subr.bf16.mxu0 0
  %1623 = vmatpush1.bf16.msra.mxu0 0
  %1624 = vmatprep.subr.bf16.mxu0 0
  %1625 = vmatpush1.bf16.msra.mxu0 0
  %1626 = vmatprep.subr.bf16.mxu0 0
  %1627 = vmatpush1.bf16.msra.mxu0 0
  %1628 = vmatprep.subr.bf16.mxu0 0
  %1629 = vmatpush1.bf16.msra.mxu0 0
  %1630 = vmatprep.subr.bf16.mxu0 0
  %1631 = vmatpush1.bf16.msra.mxu0 0
  %1632 = vmatprep.subr.bf16.mxu0 0
  %1633 = vmatpush1.bf16.msra.mxu0 0
  %1634 = vmatprep.subr.bf16.mxu0 0
  %1635 = vmatpush1.bf16.msra.mxu0 0
  %1636 = vmatprep.subr.bf16.mxu0 0
  %1637 = vmatpush1.bf16.msra.mxu0 0
  %1638 = vmatprep.subr.bf16.mxu0 0
  %1639 = vmatpush1.bf16.msra.mxu0 0
  %1640 = vmatprep.subr.bf16.mxu0 0
  %1641 = vmatpush1.bf16.msra.mxu0 0
  %1642 = vmatprep.subr.bf16.mxu0 0
  %1643 = vmatpush1.bf16.msra.mxu0 0
  %1644 = vmatprep.subr.bf16.mxu0 0
  %1645 = vmatpush1.bf16.msra.mxu0 0
  %1646 = vmatprep.mubr.bf16.mxu0 0
  %1647 = vmatmul.mubr.bf16.gmra.mrb[0].mxu0 %v1612
  %v1648 = vpop.f32.mrb[0].mxu0
  %v1649 = vadd.f32 0.0, %v1648
  %v1650 = vpop.f32.mrb[0].mxu0
  %v1651 = vpop.f32.mrb[0].mxu0
  %v1652 = vadd.f32 0.0, %v1651
  %v1653 = vpop.f32.mrb[0].mxu0
  %1654 = vdwg.mxu0
  %1655 = vrot.lane.b32.xlu0 %v1258, 96
  %v1656 = vpop.permute.xlu0 %1655
  %v1659 = vsel %vm246, %v1561, 0
  %1661 = vmatprep.subr.bf16.mxu0 0
  %1662 = vmatpush1.bf16.msra.mxu0 %v1656
  %1663 = vmatprep.subr.bf16.mxu0 0
  %1664 = vmatpush1.bf16.msra.mxu0 0
  %1665 = vmatprep.subr.bf16.mxu0 0
  %1666 = vmatpush1.bf16.msra.mxu0 0
  %1667 = vmatprep.subr.bf16.mxu0 0
  %1668 = vmatpush1.bf16.msra.mxu0 0
  %1669 = vmatprep.subr.bf16.mxu0 0
  %1670 = vmatpush1.bf16.msra.mxu0 0
  %1671 = vmatprep.subr.bf16.mxu0 0
  %1672 = vmatpush1.bf16.msra.mxu0 0
  %1673 = vmatprep.subr.bf16.mxu0 0
  %1674 = vmatpush1.bf16.msra.mxu0 0
  %1675 = vmatprep.subr.bf16.mxu0 0
  %1676 = vmatpush1.bf16.msra.mxu0 0
  %1677 = vmatprep.subr.bf16.mxu0 0
  %1678 = vmatpush1.bf16.msra.mxu0 0
  %1679 = vmatprep.subr.bf16.mxu0 0
  %1680 = vmatpush1.bf16.msra.mxu0 0
  %1681 = vmatprep.subr.bf16.mxu0 0
  %1682 = vmatpush1.bf16.msra.mxu0 0
  %1683 = vmatprep.subr.bf16.mxu0 0
  %1684 = vmatpush1.bf16.msra.mxu0 0
  %1685 = vmatprep.subr.bf16.mxu0 0
  %1686 = vmatpush1.bf16.msra.mxu0 0
  %1687 = vmatprep.subr.bf16.mxu0 0
  %1688 = vmatpush1.bf16.msra.mxu0 0
  %1689 = vmatprep.subr.bf16.mxu0 0
  %1690 = vmatpush1.bf16.msra.mxu0 0
  %1691 = vmatprep.subr.bf16.mxu0 0
  %1692 = vmatpush1.bf16.msra.mxu0 0
  %1693 = vmatprep.mubr.bf16.mxu0 0
  %1694 = vmatmul.mubr.bf16.gmra.mrb[0].mxu0 %v1659
  %v1695 = vpop.f32.mrb[0].mxu0
  %v1696 = vadd.f32 0.0, %v1695
  %v1697 = vpop.f32.mrb[0].mxu0
  %v1698 = vpop.f32.mrb[0].mxu0
  %v1699 = vadd.f32 0.0, %v1698
  %v1700 = vpop.f32.mrb[0].mxu0
  %1701 = vdwg.mxu0
  %1702 = vrot.lane.b32.xlu0 %v1258, 80
  %v1703 = vpop.permute.xlu0 %1702
  %v1706 = vsel %vm246, %v1562, 0
  %1708 = vmatprep.subr.bf16.mxu0 0
  %1709 = vmatpush1.bf16.msra.mxu0 %v1703
  %1710 = vmatprep.subr.bf16.mxu0 0
  %1711 = vmatpush1.bf16.msra.mxu0 0
  %1712 = vmatprep.subr.bf16.mxu0 0
  %1713 = vmatpush1.bf16.msra.mxu0 0
  %1714 = vmatprep.subr.bf16.mxu0 0
  %1715 = vmatpush1.bf16.msra.mxu0 0
  %1716 = vmatprep.subr.bf16.mxu0 0
  %1717 = vmatpush1.bf16.msra.mxu0 0
  %1718 = vmatprep.subr.bf16.mxu0 0
  %1719 = vmatpush1.bf16.msra.mxu0 0
  %1720 = vmatprep.subr.bf16.mxu0 0
  %1721 = vmatpush1.bf16.msra.mxu0 0
  %1722 = vmatprep.subr.bf16.mxu0 0
  %1723 = vmatpush1.bf16.msra.mxu0 0
  %1724 = vmatprep.subr.bf16.mxu0 0
  %1725 = vmatpush1.bf16.msra.mxu0 0
  %1726 = vmatprep.subr.bf16.mxu0 0
  %1727 = vmatpush1.bf16.msra.mxu0 0
  %1728 = vmatprep.subr.bf16.mxu0 0
  %1729 = vmatpush1.bf16.msra.mxu0 0
  %1730 = vmatprep.subr.bf16.mxu0 0
  %1731 = vmatpush1.bf16.msra.mxu0 0
  %1732 = vmatprep.subr.bf16.mxu0 0
  %1733 = vmatpush1.bf16.msra.mxu0 0
  %1734 = vmatprep.subr.bf16.mxu0 0
  %1735 = vmatpush1.bf16.msra.mxu0 0
  %1736 = vmatprep.subr.bf16.mxu0 0
  %1737 = vmatpush1.bf16.msra.mxu0 0
  %1738 = vmatprep.subr.bf16.mxu0 0
  %1739 = vmatpush1.bf16.msra.mxu0 0
  %1740 = vmatprep.mubr.bf16.mxu0 0
  %1741 = vmatmul.mubr.bf16.gmra.mrb[0].mxu0 %v1706
  %v1742 = vpop.f32.mrb[0].mxu0
  %v1743 = vadd.f32 0.0, %v1742
  %v1744 = vpop.f32.mrb[0].mxu0
  %v1745 = vpop.f32.mrb[0].mxu0
  %v1746 = vadd.f32 0.0, %v1745
  %v1747 = vpop.f32.mrb[0].mxu0
  %1748 = vdwg.mxu0
  %1751 = vrot.lane.b32.xlu0 %v1649, 16
  %v1752 = vpop.permute.xlu0 %1751
  %1753 = vrot.lane.b32.xlu0 %v1652, 16
  %v1754 = vpop.permute.xlu0 %1753
  %1759 = vrot.lane.b32.xlu0 %v1696, 32
  %v1760 = vpop.permute.xlu0 %1759
  %1761 = vrot.lane.b32.xlu0 %v1699, 32
  %v1762 = vpop.permute.xlu0 %1761
  %1767 = vrot.lane.b32.xlu0 %v1743, 48
  %v1768 = vpop.permute.xlu0 %1767
  %1769 = vrot.lane.b32.xlu0 %v1746, 48
  %v1770 = vpop.permute.xlu0 %1769
  %v1773 = vsel %vm246, %v1601, %v1752
  %v1774 = vsel %vm246, %v1604, %v1754
  %v1775 = vsel %vm760, %v1773, %v1760
  %v1776 = vsel %vm760, %v1774, %v1762
  %v1777 = vsel %vm763, %v1775, %v1768
  %v1778 = vsel %vm763, %v1776, %v1770
  %v1779 = vpack.c.bf16 %v1778, %v1777
  %v1780 = vlaneseq
  %v1781 = vshrl.u32 %v1780, 7
  %v1782 = vsub.s32 0, %v1781
  %v1783 = vrot.slane %v1155, %v1782
  %v1792 = vunpack.c.l.b16 %v1118
  %v1793 = vunpack.c.l.b16 %v1119
  %v1794 = vunpack.c.l.b16 %v1120
  %v1795 = vunpack.c.l.b16 %v1121
  %v1796 = vunpack.c.l.b16 %v1122
  %v1797 = vunpack.c.l.b16 %v1123
  %v1798 = vunpack.c.l.b16 %v1124
  %v1799 = vunpack.c.l.b16 %v1125
  %v1800 = vpack.c.b16 %v1793, %v1792
  %v1801 = vpack.c.b16 %v1795, %v1794
  %v1802 = vpack.c.b16 %v1797, %v1796
  %v1803 = vpack.c.b16 %v1799, %v1798
  %v1809 = vsel %vm49, %v1779, 0
  %1811 = vmatprep.subr.bf16.mxu0 0
  %1812 = vmatpush1.bf16.msra.mxu0 %v1800
  %1813 = vmatprep.subr.bf16.mxu0 0
  %1814 = vmatpush1.bf16.msra.mxu0 %v1801
  %1815 = vmatprep.subr.bf16.mxu0 0
  %1816 = vmatpush1.bf16.msra.mxu0 %v1802
  %1817 = vmatprep.subr.bf16.mxu0 0
  %1818 = vmatpush1.bf16.msra.mxu0 %v1803
  %1819 = vmatprep.subr.bf16.mxu0 0
  %1820 = vmatpush1.bf16.msra.mxu0 0
  %1821 = vmatprep.subr.bf16.mxu0 0
  %1822 = vmatpush1.bf16.msra.mxu0 0
  %1823 = vmatprep.subr.bf16.mxu0 0
  %1824 = vmatpush1.bf16.msra.mxu0 0
  %1825 = vmatprep.subr.bf16.mxu0 0
  %1826 = vmatpush1.bf16.msra.mxu0 0
  %1827 = vmatprep.subr.bf16.mxu0 0
  %1828 = vmatpush1.bf16.msra.mxu0 0
  %1829 = vmatprep.subr.bf16.mxu0 0
  %1830 = vmatpush1.bf16.msra.mxu0 0
  %1831 = vmatprep.subr.bf16.mxu0 0
  %1832 = vmatpush1.bf16.msra.mxu0 0
  %1833 = vmatprep.subr.bf16.mxu0 0
  %1834 = vmatpush1.bf16.msra.mxu0 0
  %1835 = vmatprep.subr.bf16.mxu0 0
  %1836 = vmatpush1.bf16.msra.mxu0 0
  %1837 = vmatprep.subr.bf16.mxu0 0
  %1838 = vmatpush1.bf16.msra.mxu0 0
  %1839 = vmatprep.subr.bf16.mxu0 0
  %1840 = vmatpush1.bf16.msra.mxu0 0
  %1841 = vmatprep.subr.bf16.mxu0 0
  %1842 = vmatpush1.bf16.msra.mxu0 0
  %1843 = vmatprep.mubr.bf16.mxu0 0
  %1844 = vmatmul.mubr.bf16.gmra.mrb[0].mxu0 %v1809
  %v1845 = vpop.f32.mrb[0].mxu0
  %v1846 = vadd.f32 %v1783, %v1845
  %v1847 = vpop.f32.mrb[0].mxu0
  %v1848 = vpop.f32.mrb[0].mxu0
  %v1849 = vadd.f32 %v1783, %v1848
  %v1850 = vpop.f32.mrb[0].mxu0
  %1851 = vdwg.mxu0
  %v1852 = vadd.f32 %v1104, %v1846
  %v1853 = vadd.f32 %v1105, %v1849
  %v1854 = vsel %vm49, %v1852, 0.0
  %1855 = vadd.xlane.f32.xlu0 %v1854
  %v1856 = vpop.xlane.xlu0 %1855
  %v1857 = vsel %vm49, %v1853, 0.0
  %1858 = vadd.xlane.f32.xlu0 %v1857
  %v1859 = vpop.xlane.xlu0 %1858
  %v1860 = vmul.f32 %v1856, %v56
  %v1861 = vmul.f32 %v1859, %v56
  %v1862 = vsub.f32 %v1852, %v1860
  %v1863 = vsub.f32 %v1853, %v1861
  %v1864 = vmul.f32 %v1862, %v1862
  %v1865 = vmul.f32 %v1863, %v1863
  %v1866 = vsel %vm49, %v1864, 0.0
  %1867 = vadd.xlane.f32.xlu0 %v1866
  %v1868 = vpop.xlane.xlu0 %1867
  %v1869 = vsel %vm49, %v1865, 0.0
  %1870 = vadd.xlane.f32.xlu0 %v1869
  %v1871 = vpop.xlane.xlu0 %1870
  %v1872 = vmul.f32 %v1868, %v56
  %v1873 = vmul.f32 %v1871, %v56
  %v1874 = vadd.f32 %v1872, 1e-05
  %v1875 = vadd.f32 %v1873, 1e-05
  %v1876 = vrsqrt.pop %v1874
  %v1877 = vrsqrt.pop %v1875
  %v1878 = vmul.f32 %v1862, %v1876
  %v1879 = vmul.f32 %v1863, %v1877
  %v1880 = vlaneseq
  %v1881 = vshrl.u32 %v1880, 7
  %v1882 = vsub.s32 1, %v1881
  %v1883 = vrot.slane %v1155, %v1882
  %v1884 = vmul.f32 %v1878, %v1883
  %v1885 = vmul.f32 %v1879, %v1883
  %v1886 = vlaneseq
  %v1887 = vshrl.u32 %v1886, 7
  %v1888 = vsub.s32 2, %v1887
  %v1889 = vrot.slane %v1155, %v1888
  %v1890 = vadd.f32 %v1884, %v1889
  %v1891 = vadd.f32 %v1885, %v1889
  %v1892 = vpack.c.bf16 %v1891, %v1890
  %v1894 = vlaneseq
  %v1895 = vshrl.u32 %v1894, 7
  %v1896 = vsub.s32 0, %v1895
  %v1897 = vrot.slane %v1136, %v1896
  %v1907 = vunpack.c.l.b16 %v1127
  %v1908 = vunpack.c.l.b16 %v1128
  %v1909 = vunpack.c.l.b16 %v1129
  %v1910 = vunpack.c.l.b16 %v1130
  %v1911 = vunpack.c.l.b16 %v1131
  %v1912 = vunpack.c.l.b16 %v1132
  %v1913 = vunpack.c.l.b16 %v1133
  %v1914 = vunpack.c.l.b16 %v1134
  %v1915 = vpack.c.b16 %v1908, %v1907
  %v1916 = vpack.c.b16 %v1910, %v1909
  %v1917 = vpack.c.b16 %v1912, %v1911
  %v1918 = vpack.c.b16 %v1914, %v1913
  %v1924 = vsel %vm49, %v1892, 0
  %1926 = vmatprep.subr.bf16.mxu0 0
  %1927 = vmatpush1.bf16.msra.mxu0 %v1915
  %1928 = vmatprep.subr.bf16.mxu0 0
  %1929 = vmatpush1.bf16.msra.mxu0 %v1916
  %1930 = vmatprep.subr.bf16.mxu0 0
  %1931 = vmatpush1.bf16.msra.mxu0 %v1917
  %1932 = vmatprep.subr.bf16.mxu0 0
  %1933 = vmatpush1.bf16.msra.mxu0 %v1918
  %1934 = vmatprep.subr.bf16.mxu0 0
  %1935 = vmatpush1.bf16.msra.mxu0 0
  %1936 = vmatprep.subr.bf16.mxu0 0
  %1937 = vmatpush1.bf16.msra.mxu0 0
  %1938 = vmatprep.subr.bf16.mxu0 0
  %1939 = vmatpush1.bf16.msra.mxu0 0
  %1940 = vmatprep.subr.bf16.mxu0 0
  %1941 = vmatpush1.bf16.msra.mxu0 0
  %1942 = vmatprep.subr.bf16.mxu0 0
  %1943 = vmatpush1.bf16.msra.mxu0 0
  %1944 = vmatprep.subr.bf16.mxu0 0
  %1945 = vmatpush1.bf16.msra.mxu0 0
  %1946 = vmatprep.subr.bf16.mxu0 0
  %1947 = vmatpush1.bf16.msra.mxu0 0
  %1948 = vmatprep.subr.bf16.mxu0 0
  %1949 = vmatpush1.bf16.msra.mxu0 0
  %1950 = vmatprep.subr.bf16.mxu0 0
  %1951 = vmatpush1.bf16.msra.mxu0 0
  %1952 = vmatprep.subr.bf16.mxu0 0
  %1953 = vmatpush1.bf16.msra.mxu0 0
  %1954 = vmatprep.subr.bf16.mxu0 0
  %1955 = vmatpush1.bf16.msra.mxu0 0
  %1956 = vmatprep.subr.bf16.mxu0 0
  %1957 = vmatpush1.bf16.msra.mxu0 0
  %1958 = vmatprep.mubr.bf16.mxu0 0
  %1959 = vmatmul.mubr.bf16.gmra.mrb[0].mxu0 %v1924
  %v1960 = vpop.f32.mrb[0].mxu0
  %v1961 = vadd.f32 %v1897, %v1960
  %v1962 = vpop.f32.mrb[0].mxu0
  %v1963 = vpop.f32.mrb[0].mxu0
  %v1964 = vadd.f32 %v1897, %v1963
  %v1965 = vpop.f32.mrb[0].mxu0
  %1966 = vdwg.mxu0
  %v1967 = vmul.f32 %v1961, %v1961
  %v1968 = vmul.f32 %v1964, %v1964
  %v1969 = vmul.f32 %v1961, %v1967
  %v1970 = vmul.f32 %v1964, %v1968
  %v1971 = vmul.f32 %v1969, 0.044715
  %v1972 = vmul.f32 %v1970, 0.044715
  %v1973 = vadd.f32 %v1961, %v1971
  %v1974 = vadd.f32 %v1964, %v1972
  %v1975 = vmul.f32 %v1973, 0.7978846
  %v1976 = vmul.f32 %v1974, 0.7978846
  %v1977 = vtanh.pop %v1975
  %v1978 = vtanh.pop %v1976
  %v1979 = vadd.f32 %v1977, 1.0
  %v1980 = vadd.f32 %v1978, 1.0
  %v1981 = vmul.f32 %v1979, 0.5
  %v1982 = vmul.f32 %v1980, 0.5
  %v1983 = vmul.f32 %v1961, %v1981
  %v1984 = vmul.f32 %v1964, %v1982
  %v1985 = vpack.c.bf16 %v1984, %v1983
  %v1986 = vlaneseq
  %v1987 = vshrl.u32 %v1986, 7
  %v1988 = vsub.s32 3, %v1987
  %v1989 = vrot.slane %v1155, %v1988
  %v2006 = vunpack.c.l.b16 %v1138
  %v2007 = vunpack.c.l.b16 %v1139
  %v2008 = vunpack.c.l.b16 %v1140
  %v2009 = vunpack.c.l.b16 %v1141
  %v2010 = vunpack.c.l.b16 %v1142
  %v2011 = vunpack.c.l.b16 %v1143
  %v2012 = vunpack.c.l.b16 %v1144
  %v2013 = vunpack.c.l.b16 %v1145
  %v2014 = vunpack.c.l.b16 %v1146
  %v2015 = vunpack.c.l.b16 %v1147
  %v2016 = vunpack.c.l.b16 %v1148
  %v2017 = vunpack.c.l.b16 %v1149
  %v2018 = vunpack.c.l.b16 %v1150
  %v2019 = vunpack.c.l.b16 %v1151
  %v2020 = vunpack.c.l.b16 %v1152
  %v2021 = vunpack.c.l.b16 %v1153
  %v2022 = vpack.c.b16 %v2007, %v2006
  %v2023 = vpack.c.b16 %v2009, %v2008
  %v2024 = vpack.c.b16 %v2011, %v2010
  %v2025 = vpack.c.b16 %v2013, %v2012
  %v2026 = vpack.c.b16 %v2015, %v2014
  %v2027 = vpack.c.b16 %v2017, %v2016
  %v2028 = vpack.c.b16 %v2019, %v2018
  %v2029 = vpack.c.b16 %v2021, %v2020
  %2038 = vmatprep.subr.bf16.mxu0 0
  %2039 = vmatpush1.bf16.msra.mxu0 %v2022
  %2040 = vmatprep.subr.bf16.mxu0 0
  %2041 = vmatpush1.bf16.msra.mxu0 %v2023
  %2042 = vmatprep.subr.bf16.mxu0 0
  %2043 = vmatpush1.bf16.msra.mxu0 %v2024
  %2044 = vmatprep.subr.bf16.mxu0 0
  %2045 = vmatpush1.bf16.msra.mxu0 %v2025
  %2046 = vmatprep.subr.bf16.mxu0 0
  %2047 = vmatpush1.bf16.msra.mxu0 %v2026
  %2048 = vmatprep.subr.bf16.mxu0 0
  %2049 = vmatpush1.bf16.msra.mxu0 %v2027
  %2050 = vmatprep.subr.bf16.mxu0 0
  %2051 = vmatpush1.bf16.msra.mxu0 %v2028
  %2052 = vmatprep.subr.bf16.mxu0 0
  %2053 = vmatpush1.bf16.msra.mxu0 %v2029
  %2054 = vmatprep.subr.bf16.mxu0 0
  %2055 = vmatpush1.bf16.msra.mxu0 0
  %2056 = vmatprep.subr.bf16.mxu0 0
  %2057 = vmatpush1.bf16.msra.mxu0 0
  %2058 = vmatprep.subr.bf16.mxu0 0
  %2059 = vmatpush1.bf16.msra.mxu0 0
  %2060 = vmatprep.subr.bf16.mxu0 0
  %2061 = vmatpush1.bf16.msra.mxu0 0
  %2062 = vmatprep.subr.bf16.mxu0 0
  %2063 = vmatpush1.bf16.msra.mxu0 0
  %2064 = vmatprep.subr.bf16.mxu0 0
  %2065 = vmatpush1.bf16.msra.mxu0 0
  %2066 = vmatprep.subr.bf16.mxu0 0
  %2067 = vmatpush1.bf16.msra.mxu0 0
  %2068 = vmatprep.subr.bf16.mxu0 0
  %2069 = vmatpush1.bf16.msra.mxu0 0
  %2070 = vmatprep.mubr.bf16.mxu0 0
  %2071 = vmatmul.mubr.bf16.gmra.mrb[0].mxu0 %v1985
  %v2072 = vpop.f32.mrb[0].mxu0
  %v2073 = vadd.f32 %v1989, %v2072
  %v2074 = vpop.f32.mrb[0].mxu0
  %v2075 = vpop.f32.mrb[0].mxu0
  %v2076 = vadd.f32 %v1989, %v2075
  %v2077 = vpop.f32.mrb[0].mxu0
  %2078 = vdwg.mxu0
  %v2079 = vadd.f32 %v1890, %v2073
  %v2080 = vadd.f32 %v1891, %v2076
  %v2081 = vsel %vm49, %v2079, 0.0
  %2082 = vadd.xlane.f32.xlu0 %v2081
  %v2083 = vpop.xlane.xlu0 %2082
  %v2084 = vsel %vm49, %v2080, 0.0
  %2085 = vadd.xlane.f32.xlu0 %v2084
  %v2086 = vpop.xlane.xlu0 %2085
  %v2087 = vmul.f32 %v2083, %v56
  %v2088 = vmul.f32 %v2086, %v56
  %v2089 = vsub.f32 %v2079, %v2087
  %v2090 = vsub.f32 %v2080, %v2088
  %v2091 = vmul.f32 %v2089, %v2089
  %v2092 = vmul.f32 %v2090, %v2090
  %v2093 = vsel %vm49, %v2091, 0.0
  %2094 = vadd.xlane.f32.xlu0 %v2093
  %v2095 = vpop.xlane.xlu0 %2094
  %v2096 = vsel %vm49, %v2092, 0.0
  %2097 = vadd.xlane.f32.xlu0 %v2096
  %v2098 = vpop.xlane.xlu0 %2097
  %v2099 = vmul.f32 %v2095, %v56
  %v2100 = vmul.f32 %v2098, %v56
  %v2101 = vadd.f32 %v2099, 1e-05
  %v2102 = vadd.f32 %v2100, 1e-05
  %v2103 = vrsqrt.pop %v2101
  %v2104 = vrsqrt.pop %v2102
  %v2105 = vmul.f32 %v2089, %v2103
  %v2106 = vmul.f32 %v2090, %v2104
  %v2107 = vlaneseq
  %v2108 = vshrl.u32 %v2107, 7
  %v2109 = vsub.s32 4, %v2108
  %v2110 = vrot.slane %v1155, %v2109
  %v2111 = vmul.f32 %v2105, %v2110
  %v2112 = vmul.f32 %v2106, %v2110
  %v2113 = vlaneseq
  %v2114 = vshrl.u32 %v2113, 7
  %v2115 = vsub.s32 5, %v2114
  %v2116 = vrot.slane %v1155, %v2115
  %v2117 = vadd.f32 %v2111, %v2116
  %v2118 = vadd.f32 %v2112, %v2116
  %v2119 = vpack.c.bf16 %v2117, %v2117
  %v2120 = vpack.c.bf16 %v2118, %v2118
  %v2121 = vld [vmem:[%s10] sm:$0xf]
  %v2122 = vld [vmem:[%s10 + $0x4] sm:$0xf]
  %v2123 = vld [vmem:[%s10 + $0x8] sm:$0xf]
  %v2124 = vld [vmem:[%s10 + $0xc] sm:$0xf]
  %v2125 = vld [vmem:[%s10 + $0x10] sm:$0xf]
  %v2126 = vld [vmem:[%s10 + $0x14] sm:$0xf]
  %v2127 = vld [vmem:[%s10 + $0x18] sm:$0xf]
  %v2128 = vld [vmem:[%s10 + $0x1c] sm:$0xf]
  %v2129 = vld [vmem:[%s2 + $0x2] sm:$0x1]
  %v2130 = vlaneseq
  %v2131 = vshrl.u32 %v2130, 7
  %v2132 = vsub.s32 0, %v2131
  %v2133 = vrot.slane %v2129, %v2132
  %v2136 = vunpack.c.l.b16 %v2119
  %v2137 = vunpack.c.l.b16 %v2120
  %v2138 = vrot.slane %v2137, 7
  %vm2139 = vcmask 1041409
  %v2140 = vsel %vm2139, %v2138, %v2136
  %v2141 = vpack.c.b16 %v2140, %v2140
  %v2150 = vunpack.c.l.b16 %v2121
  %v2151 = vunpack.c.l.b16 %v2122
  %v2152 = vunpack.c.l.b16 %v2123
  %v2153 = vunpack.c.l.b16 %v2124
  %v2154 = vunpack.c.l.b16 %v2125
  %v2155 = vunpack.c.l.b16 %v2126
  %v2156 = vunpack.c.l.b16 %v2127
  %v2157 = vunpack.c.l.b16 %v2128
  %v2158 = vpack.c.b16 %v2151, %v2150
  %v2159 = vpack.c.b16 %v2153, %v2152
  %v2160 = vpack.c.b16 %v2155, %v2154
  %v2161 = vpack.c.b16 %v2157, %v2156
  %v2167 = vsel %vm49, %v2141, 0
  %2169 = vmatprep.subr.bf16.mxu0 0
  %2170 = vmatpush1.bf16.msra.mxu0 %v2158
  %2171 = vmatprep.subr.bf16.mxu0 0
  %2172 = vmatpush1.bf16.msra.mxu0 %v2159
  %2173 = vmatprep.subr.bf16.mxu0 0
  %2174 = vmatpush1.bf16.msra.mxu0 %v2160
  %2175 = vmatprep.subr.bf16.mxu0 0
  %2176 = vmatpush1.bf16.msra.mxu0 %v2161
  %2177 = vmatprep.subr.bf16.mxu0 0
  %2178 = vmatpush1.bf16.msra.mxu0 0
  %2179 = vmatprep.subr.bf16.mxu0 0
  %2180 = vmatpush1.bf16.msra.mxu0 0
  %2181 = vmatprep.subr.bf16.mxu0 0
  %2182 = vmatpush1.bf16.msra.mxu0 0
  %2183 = vmatprep.subr.bf16.mxu0 0
  %2184 = vmatpush1.bf16.msra.mxu0 0
  %2185 = vmatprep.subr.bf16.mxu0 0
  %2186 = vmatpush1.bf16.msra.mxu0 0
  %2187 = vmatprep.subr.bf16.mxu0 0
  %2188 = vmatpush1.bf16.msra.mxu0 0
  %2189 = vmatprep.subr.bf16.mxu0 0
  %2190 = vmatpush1.bf16.msra.mxu0 0
  %2191 = vmatprep.subr.bf16.mxu0 0
  %2192 = vmatpush1.bf16.msra.mxu0 0
  %2193 = vmatprep.subr.bf16.mxu0 0
  %2194 = vmatpush1.bf16.msra.mxu0 0
  %2195 = vmatprep.subr.bf16.mxu0 0
  %2196 = vmatpush1.bf16.msra.mxu0 0
  %2197 = vmatprep.subr.bf16.mxu0 0
  %2198 = vmatpush1.bf16.msra.mxu0 0
  %2199 = vmatprep.subr.bf16.mxu0 0
  %2200 = vmatpush1.bf16.msra.mxu0 0
  %2201 = vmatprep.mubr.bf16.mxu0 0
  %2202 = vmatmul.mubr.bf16.gmra.mrb[0].mxu0 %v2167
  %v2203 = vpop.f32.mrb[0].mxu0
  %v2204 = vadd.f32 %v2133, %v2203
  %v2205 = vpop.f32.mrb[0].mxu0
  %v2206 = vpop.f32.mrb[0].mxu0
  %v2207 = vpop.f32.mrb[0].mxu0
  %2208 = vdwg.mxu0
  %v2209 = vtanh.pop %v2204
  %v2210 = vpack.c.bf16 %v2209, %v2209
  %v2211 = vld [vmem:[%s11] sm:$0xf]
  %v2212 = vld [vmem:[%s11 + $0x4] sm:$0xf]
  %v2213 = vld [vmem:[%s11 + $0x8] sm:$0xf]
  %v2214 = vld [vmem:[%s11 + $0xc] sm:$0xf]
  %v2215 = vld [vmem:[%s11 + $0x10] sm:$0xf]
  %v2216 = vld [vmem:[%s11 + $0x14] sm:$0xf]
  %v2217 = vld [vmem:[%s11 + $0x18] sm:$0xf]
  %v2218 = vld [vmem:[%s11 + $0x1c] sm:$0xf]
  %v2219 = vld [vmem:[%s12] sm:$0x1]
  %v2221 = vlaneseq
  %v2222 = vshrl.u32 %v2221, 7
  %v2223 = vsub.s32 0, %v2222
  %v2224 = vrot.slane %v2219, %v2223
  %v2234 = vunpack.c.l.b16 %v2211
  %v2235 = vunpack.c.l.b16 %v2212
  %v2236 = vunpack.c.l.b16 %v2213
  %v2237 = vunpack.c.l.b16 %v2214
  %v2238 = vunpack.c.l.b16 %v2215
  %v2239 = vunpack.c.l.b16 %v2216
  %v2240 = vunpack.c.l.b16 %v2217
  %v2241 = vunpack.c.l.b16 %v2218
  %v2242 = vpack.c.b16 %v2235, %v2234
  %v2243 = vpack.c.b16 %v2237, %v2236
  %v2244 = vpack.c.b16 %v2239, %v2238
  %v2245 = vpack.c.b16 %v2241, %v2240
  %v2251 = vsel %vm49, %v2210, 0
  %2253 = vmatprep.subr.bf16.mxu0 0
  %2254 = vmatpush1.bf16.msra.mxu0 %v2242
  %2255 = vmatprep.subr.bf16.mxu0 0
  %2256 = vmatpush1.bf16.msra.mxu0 %v2243
  %2257 = vmatprep.subr.bf16.mxu0 0
  %2258 = vmatpush1.bf16.msra.mxu0 %v2244
  %2259 = vmatprep.subr.bf16.mxu0 0
  %2260 = vmatpush1.bf16.msra.mxu0 %v2245
  %2261 = vmatprep.subr.bf16.mxu0 0
  %2262 = vmatpush1.bf16.msra.mxu0 0
  %2263 = vmatprep.subr.bf16.mxu0 0
  %2264 = vmatpush1.bf16.msra.mxu0 0
  %2265 = vmatprep.subr.bf16.mxu0 0
  %2266 = vmatpush1.bf16.msra.mxu0 0
  %2267 = vmatprep.subr.bf16.mxu0 0
  %2268 = vmatpush1.bf16.msra.mxu0 0
  %2269 = vmatprep.subr.bf16.mxu0 0
  %2270 = vmatpush1.bf16.msra.mxu0 0
  %2271 = vmatprep.subr.bf16.mxu0 0
  %2272 = vmatpush1.bf16.msra.mxu0 0
  %2273 = vmatprep.subr.bf16.mxu0 0
  %2274 = vmatpush1.bf16.msra.mxu0 0
  %2275 = vmatprep.subr.bf16.mxu0 0
  %2276 = vmatpush1.bf16.msra.mxu0 0
  %2277 = vmatprep.subr.bf16.mxu0 0
  %2278 = vmatpush1.bf16.msra.mxu0 0
  %2279 = vmatprep.subr.bf16.mxu0 0
  %2280 = vmatpush1.bf16.msra.mxu0 0
  %2281 = vmatprep.subr.bf16.mxu0 0
  %2282 = vmatpush1.bf16.msra.mxu0 0
  %2283 = vmatprep.subr.bf16.mxu0 0
  %2284 = vmatpush1.bf16.msra.mxu0 0
  %2285 = vmatprep.mubr.bf16.mxu0 0
  %2286 = vmatmul.mubr.bf16.gmra.mrb[0].mxu0 %v2251
  %v2287 = vpop.f32.mrb[0].mxu0
  %v2288 = vadd.f32 %v2224, %v2287
  %v2289 = vpop.f32.mrb[0].mxu0
  %v2290 = vpop.f32.mrb[0].mxu0
  %v2291 = vpop.f32.mrb[0].mxu0
  %2292 = vdwg.mxu0
  %vm2293 = vcmask 1041408
  %v2294 = vsel %vm2293, %v2288, 0.0
  %2295 = vst [vmem:[%s13] sm:$0xff] %v2294
  // Predicated region
  $region54: #{cuai_forward.1} parent=0 // pred_check
    _
  $region55: #{cuai_forward.1} parent=0 // pred_check_branch
    %2297 = sbr.rel (0) target = $region57
  $region56: #{cuai_forward.1} parent=0 // pred_region
    _
  $region57: #{cuai_forward.1} parent=0 // pred_fallthru
    _
  // Predicated region
  $region58: #{cuai_forward.1} parent=0 // pred_check
    _
  $region59: #{cuai_forward.1} parent=0 // pred_check_branch
    %2299 = sbr.rel (0) target = $region61
  $region60: #{cuai_forward.1} parent=0 // pred_region
    _
  $region61: #{cuai_forward.1} parent=0 // pred_fallthru
    _

</llo_original>
